<compile_context>
chip_gen: v7x
topology: tpu7x:2x2x1
jax: 0.10.0
libtpu: 0.0.40
codegen_flags: <defaults>
</compile_context>

<pallas_src>
import functools

import jax
import jax.numpy as jnp
from jax import lax
from jax.experimental import pallas as pl
from jax.experimental.pallas import tpu as pltpu

EPS = 1e-4  # _sigmoid() clamp from CenterTrack


def generic_loss_kernel(weights, num_stacks,
                        hm_ref, gt_ref, reg_ref,
                        ind_ref, cat_ref, mask_ref,
                        reg_tgt_ref, reg_msk_ref,
                        trk_tgt_ref, trk_msk_ref,
                        ltrb_tgt_ref, ltrb_msk_ref,
                        out_ref,
                        gath_hm_ref, gath_reg_ref, negacc_ref):
    B, C, T = hm_ref.shape          # hm tile: (B, C, TILE_HW)
    _, M = ind_ref.shape

    p = pl.program_id(0)            # partial (parallel axis)
    t = pl.program_id(1)            # hw tile within the partial (arbitrary)
    nt = pl.num_programs(1)

    # ---------------- init accumulators at first tile of this partial ------
    @pl.when(t == 0)
    def _init():
        gath_hm_ref[...] = jnp.zeros_like(gath_hm_ref)
        gath_reg_ref[...] = jnp.zeros_like(gath_reg_ref)
        negacc_ref[...] = jnp.zeros_like(negacc_ref)

    # ---------------- per-tile focal negative term --------------------------
    # sigmoid computed once per tile and reused for the gather below.
    hm = jnp.clip(jax.nn.sigmoid(hm_ref[...]), EPS, 1.0 - EPS)     # (B,C,T)
    gt = gt_ref[...]
    g1 = 1.0 - gt
    g2 = g1 * g1
    tile_neg = jnp.sum(jnp.log(1.0 - hm) * hm * hm * (g2 * g2))
    negacc_ref[...] = negacc_ref[...] + tile_neg                   # (1,128) splat

    # ---------------- per-tile one-hot gather (shared across heads) ---------
    offset = (p * nt + t) * T
    ind = ind_ref[...]                                             # (B,M) i32
    pix = lax.broadcasted_iota(jnp.int32, (B, M, T), 2) + offset
    onehot = (ind[:, :, None] == pix).astype(jnp.float32)          # (B,M,T)

    gath_hm_ref[...] += jnp.einsum('bmt,bct->bmc', onehot, hm,
                                   preferred_element_type=jnp.float32)
    gath_reg_ref[...] += jnp.einsum('bmt,bct->bmc', onehot, reg_ref[...],
                                    preferred_element_type=jnp.float32)

    # ---------------- finalize at last tile of this partial -----------------
    @pl.when(t == nt - 1)
    def _finalize():
        cat = cat_ref[...]                                         # (B,M) i32
        msk = mask_ref[...]                                        # (B,M) f32

        # which gt objects fall inside this partial's HW range
        lo = p * (nt * T)
        in_rng = jnp.logical_and(ind >= lo, ind < lo + nt * T).astype(jnp.float32)

        # -------- FastFocalLoss positive term --------
        cat_iota = lax.broadcasted_iota(jnp.int32, (B, M, C), 2)
        onehot_cat = (cat[:, :, None] == cat_iota).astype(jnp.float32)
        pp = jnp.sum(gath_hm_ref[...] * onehot_cat, axis=2)        # (B,M)
        sel = msk * in_rng
        pp_safe = jnp.where(sel > 0.0, pp, 1.0)   # guards log(0)*0 -> NaN
        om = 1.0 - pp_safe
        pos = jnp.sum(jnp.log(pp_safe) * om * om * sel)

        num_pos = jnp.sum(msk)                                     # global
        neg = jnp.sum(negacc_ref[...]) * (1.0 / 128.0)
        hm_loss = jnp.where(num_pos > 0.0,
                            -(pos + neg) / jnp.maximum(num_pos, 1.0),
                            -neg) / num_stacks

        # -------- RegWeightedL1Loss heads (from the fused gather) --------
        gath = gath_reg_ref[...]                                   # (B,M,Creg)

        def reg_l1(pred, tgt_ref, m_ref):
            m = m_ref[...]
            tgt = tgt_ref[...]
            num = jnp.sum(jnp.abs(pred * m - tgt * m) * in_rng[:, :, None])
            return num / (jnp.sum(m) + 1e-4) / num_stacks

        c0 = reg_tgt_ref.shape[2]
        c1 = c0 + trk_tgt_ref.shape[2]
        c2 = c1 + ltrb_tgt_ref.shape[2]
        reg_loss = reg_l1(gath[:, :, 0:c0], reg_tgt_ref, reg_msk_ref)
        trk_loss = reg_l1(gath[:, :, c0:c1], trk_tgt_ref, trk_msk_ref)
        ltrb_loss = reg_l1(gath[:, :, c1:c2], ltrb_tgt_ref, ltrb_msk_ref)

        total = (weights['hm'] * hm_loss
                 + weights['reg'] * reg_loss
                 + weights['tracking'] * trk_loss
                 + weights['ltrb_amodal'] * ltrb_loss)

        zero = jnp.float32(0.0)
        rows = jnp.concatenate(
            [jnp.full((1, 128), r, dtype=jnp.float32)
             for r in (hm_loss, reg_loss, trk_loss, ltrb_loss, total,
                       zero, zero, zero)], axis=0)                 # (8,128)
        out_ref[...] = rows[None]                                  # (1,8,128)


def _pick_tile(hw, max_tile=2048):
    """Largest 128-multiple divisor of hw that is <= max_tile and leaves >=2 tiles."""
    best = hw  # fallback: one full-width tile (block == full dim is legal)
    t = 128
    while t <= min(hw // 2, max_tile):
        if hw % t == 0:
            best = t
        t += 128
    return best


def generic_loss(outputs, batch, weights, num_stacks=1, max_tile=2048,
                 num_partials=None):
    """JAX wrapper mirroring GenericLoss.forward (single stack)."""
    hm_out = outputs['hm']
    B, C, H, W = hm_out.shape
    HW = H * W
    M = batch['ind'].shape[1]

    def flat(x):  # (B, Ch, H, W) -> (B, Ch, H*W), f32
        return x.reshape(x.shape[0], x.shape[1], -1).astype(jnp.float32)

    hm = flat(hm_out)
    gt = flat(batch['hm'])
    # fuse the three regression heads (8 channels total) into one gather slab
    reg_slab = jnp.concatenate([flat(outputs['reg']),
                                flat(outputs['tracking']),
                                flat(outputs['ltrb_amodal'])], axis=1)
    Creg = reg_slab.shape[1]

    tile = _pick_tile(HW, max_tile)
    num_tiles = HW // tile
    if num_partials is None:
        num_partials = 2 if (num_tiles % 2 == 0 and num_tiles >= 2) else 1
    tiles_pp = num_tiles // num_partials

    hw_map = lambda p, t: (0, 0, p * tiles_pp + t)
    small2 = lambda p, t: (0, 0)
    small3 = lambda p, t: (0, 0, 0)

    grid_spec = pltpu.PrefetchScalarGridSpec(
        num_scalar_prefetch=0,
        grid=(num_partials, tiles_pp),
        in_specs=[
            pl.BlockSpec((B, C, tile), hw_map),                  # hm logits
            pl.BlockSpec((B, C, tile), hw_map),                  # hm gt
            pl.BlockSpec((B, Creg, tile), hw_map),               # fused reg slab
            pl.BlockSpec((B, M), small2),                        # ind
            pl.BlockSpec((B, M), small2),                        # cat
            pl.BlockSpec((B, M), small2),                        # mask
            pl.BlockSpec(batch['reg'].shape, small3),            # reg target
            pl.BlockSpec(batch['reg_mask'].shape, small3),       # reg mask
            pl.BlockSpec(batch['tracking'].shape, small3),       # tracking target
            pl.BlockSpec(batch['tracking_mask'].shape, small3),  # tracking mask
            pl.BlockSpec(batch['ltrb_amodal'].shape, small3),    # ltrb target
            pl.BlockSpec(batch['ltrb_amodal_mask'].shape, small3),  # ltrb mask
        ],
        out_specs=pl.BlockSpec((1, 8, 128), lambda p, t: (p, 0, 0)),
        scratch_shapes=[
            pltpu.VMEM((B, M, C), jnp.float32),      # gathered (clipped) hm
            pltpu.VMEM((B, M, Creg), jnp.float32),   # gathered reg slab
            pltpu.VMEM((1, 128), jnp.float32),       # focal negative accumulator
        ],
    )

    out = pl.pallas_call(
        functools.partial(generic_loss_kernel, weights, float(num_stacks)),
        grid_spec=grid_spec,
        out_shape=jax.ShapeDtypeStruct((num_partials, 8, 128), jnp.float32),
        compiler_params=pltpu.CompilerParams(
            dimension_semantics=("parallel", "arbitrary"),
            vmem_limit_bytes=64 * 1024 * 1024),
    )(hm, gt, reg_slab,
      batch['ind'].astype(jnp.int32),
      batch['cat'].astype(jnp.int32),
      batch['mask'].astype(jnp.float32),
      batch['reg'].astype(jnp.float32),
      batch['reg_mask'].astype(jnp.float32),
      batch['tracking'].astype(jnp.float32),
      batch['tracking_mask'].astype(jnp.float32),
      batch['ltrb_amodal'].astype(jnp.float32),
      batch['ltrb_amodal_mask'].astype(jnp.float32))

    sums = jnp.sum(out[:, :, 0], axis=0)   # sum per-partial loss rows
    losses = {
        'hm': sums[0],
        'reg': sums[1],
        'tracking': sums[2],
        'ltrb_amodal': sums[3],
        'total_loss': sums[4],
    }
    bz = batch['image'].shape[0]
    return losses['total_loss'] * bz, losses


# ---------------------- pure-JAX reference (for checking) ------------------
def ref_generic_loss(outputs, batch, weights, num_stacks=1):
    hm = jnp.clip(jax.nn.sigmoid(outputs['hm']), EPS, 1.0 - EPS)
    gt = batch['hm']
    neg = jnp.sum(jnp.log(1.0 - hm) * hm ** 2 * (1.0 - gt) ** 4)
    B, C, H, W = hm.shape
    ind = batch['ind']
    mask = batch['mask'].astype(jnp.float32)

    hm_f = hm.reshape(B, C, H * W)
    pred_pix = jnp.take_along_axis(hm_f, ind[:, None, :], axis=2)      # (B,C,M)
    pred_pix = jnp.transpose(pred_pix, (0, 2, 1))                      # (B,M,C)
    pos_pred = jnp.take_along_axis(pred_pix, batch['cat'][:, :, None],
                                   axis=2)[..., 0]                     # (B,M)
    num_pos = mask.sum()
    pos = jnp.sum(jnp.log(pos_pred) * (1.0 - pos_pred) ** 2 * mask)
    hm_loss = jnp.where(num_pos > 0,
                        -(pos + neg) / jnp.maximum(num_pos, 1.0),
                        -neg) / num_stacks

    def reg(head):
        o = outputs[head].reshape(B, -1, H * W)
        pred = jnp.transpose(
            jnp.take_along_axis(o, ind[:, None, :], axis=2), (0, 2, 1))
        m = batch[head + '_mask']
        t = batch[head]
        return jnp.sum(jnp.abs(pred * m - t * m)) / (m.sum() + 1e-4) / num_stacks

    losses = {'hm': hm_loss, 'reg': reg('reg'), 'tracking': reg('tracking'),
              'ltrb_amodal': reg('ltrb_amodal')}
    total = sum(weights[h] * losses[h] for h in losses)
    losses['total_loss'] = total
    return total * batch['image'].shape[0], losses


if __name__ == "__main__":
    # Small deterministic shapes: B=2, C=4 classes, 16x32 feature map, M=8 objs.
    B, C, H, W, M = 2, 4, 16, 32, 8
    HW = H * W
    weights = {'hm': 1.0, 'reg': 1.0, 'tracking': 1.0, 'ltrb_amodal': 0.1}

    key = jax.random.PRNGKey(0)
    ks = jax.random.split(key, 16)

    outputs = {
        'hm': jax.random.normal(ks[0], (B, C, H, W), jnp.float32),
        'reg': jax.random.normal(ks[1], (B, 2, H, W), jnp.float32),
        'tracking': jax.random.normal(ks[2], (B, 2, H, W), jnp.float32),
        'ltrb_amodal': jax.random.normal(ks[3], (B, 4, H, W), jnp.float32),
    }
    batch = {
        'image': jnp.zeros((B, 3, 4 * H, 4 * W), jnp.float32),
        'hm': jax.random.uniform(ks[4], (B, C, H, W), jnp.float32),
        'ind': jax.random.randint(ks[5], (B, M), 0, HW, jnp.int32),
        'mask': jax.random.randint(ks[6], (B, M), 0, 2).astype(jnp.float32),
        'cat': jax.random.randint(ks[7], (B, M), 0, C, jnp.int32),
        'reg': jax.random.normal(ks[8], (B, M, 2), jnp.float32),
        'reg_mask': jax.random.randint(ks[9], (B, M, 2), 0, 2).astype(jnp.float32),
        'tracking': jax.random.normal(ks[10], (B, M, 2), jnp.float32),
        'tracking_mask': jax.random.randint(ks[11], (B, M, 2), 0, 2).astype(jnp.float32),
        'ltrb_amodal': jax.random.normal(ks[12], (B, M, 4), jnp.float32),
        'ltrb_amodal_mask': jax.random.randint(ks[13], (B, M, 4), 0, 2).astype(jnp.float32),
    }

    # max_tile=128 -> 4 HW tiles, 2 partials x 2 tiles: exercises the pipelined
    # accumulation and the parallel-partial reduction even at toy size.
    total, losses = generic_loss(outputs, batch, weights, num_stacks=1,
                                 max_tile=128)
    total = jax.block_until_ready(total)

    ref_total, ref_losses = ref_generic_loss(outputs, batch, weights, num_stacks=1)
    ref_total = jax.block_until_ready(ref_total)

    import numpy as np
    for k in ['hm', 'reg', 'tracking', 'ltrb_amodal', 'total_loss']:
        np.testing.assert_allclose(np.asarray(losses[k]),
                                   np.asarray(ref_losses[k]),
                                   rtol=2e-3, atol=2e-3)
    np.testing.assert_allclose(np.asarray(total), np.asarray(ref_total),
                               rtol=2e-3, atol=2e-3)

    print("KERNEL_OK")
</pallas_src>

<mosaic_0001>
module attributes {stable_mosaic.version = 11 : i64} {
  func.func @generic_loss_kernel(%arg0: i32, %arg1: i32, %arg2: memref<2x4x128xf32, #tpu.memory_space<vmem>>, %arg3: memref<2x4x128xf32, #tpu.memory_space<vmem>>, %arg4: memref<2x8x128xf32, #tpu.memory_space<vmem>>, %arg5: memref<2x8xi32, #tpu.memory_space<vmem>>, %arg6: memref<2x8xi32, #tpu.memory_space<vmem>>, %arg7: memref<2x8xf32, #tpu.memory_space<vmem>>, %arg8: memref<2x8x2xf32, #tpu.memory_space<vmem>>, %arg9: memref<2x8x2xf32, #tpu.memory_space<vmem>>, %arg10: memref<2x8x2xf32, #tpu.memory_space<vmem>>, %arg11: memref<2x8x2xf32, #tpu.memory_space<vmem>>, %arg12: memref<2x8x4xf32, #tpu.memory_space<vmem>>, %arg13: memref<2x8x4xf32, #tpu.memory_space<vmem>>, %arg14: memref<1x8x128xf32, #tpu.memory_space<vmem>>, %arg15: memref<2x8x4xf32, #tpu.memory_space<vmem>>, %arg16: memref<2x8x8xf32, #tpu.memory_space<vmem>>, %arg17: memref<1x128xf32, #tpu.memory_space<vmem>>) attributes {dimension_semantics = [#tpu.dimension_semantics<parallel>, #tpu.dimension_semantics<arbitrary>], iteration_bounds = array<i64: 2, 2>, scalar_prefetch = 0 : i64, scratch_operands = 3 : i64, tpu.core_type = #tpu.core_type<tc>, window_params = [{transform_indices = @transform_0, window_bounds = array<i64: 2, 4, 128>}, {transform_indices = @transform_1, window_bounds = array<i64: 2, 4, 128>}, {transform_indices = @transform_2, window_bounds = array<i64: 2, 8, 128>}, {pipeline_mode = #tpu.pipeline_mode<synchronous>, transform_indices = @transform_3, window_bounds = array<i64: 2, 8>}, {pipeline_mode = #tpu.pipeline_mode<synchronous>, transform_indices = @transform_4, window_bounds = array<i64: 2, 8>}, {pipeline_mode = #tpu.pipeline_mode<synchronous>, transform_indices = @transform_5, window_bounds = array<i64: 2, 8>}, {pipeline_mode = #tpu.pipeline_mode<synchronous>, transform_indices = @transform_6, window_bounds = array<i64: 2, 8, 2>}, {pipeline_mode = #tpu.pipeline_mode<synchronous>, transform_indices = @transform_7, window_bounds = array<i64: 2, 8, 2>}, {pipeline_mode = #tpu.pipeline_mode<synchronous>, transform_indices = @transform_8, window_bounds = array<i64: 2, 8, 2>}, {pipeline_mode = #tpu.pipeline_mode<synchronous>, transform_indices = @transform_9, window_bounds = array<i64: 2, 8, 2>}, {pipeline_mode = #tpu.pipeline_mode<synchronous>, transform_indices = @transform_10, window_bounds = array<i64: 2, 8, 4>}, {pipeline_mode = #tpu.pipeline_mode<synchronous>, transform_indices = @transform_11, window_bounds = array<i64: 2, 8, 4>}, {transform_indices = @transform_12, window_bounds = array<i64: 1, 8, 128>}]} {
    %c0_i32 = arith.constant 0 : i32
    %0 = arith.cmpi eq, %arg1, %c0_i32 : i32
    %1 = arith.extui %0 : i1 to i32
    %c0_i32_0 = arith.constant 0 : i32
    %2 = arith.cmpi ne, %1, %c0_i32_0 : i32
    scf.if %2 {
      %cst_35 = arith.constant 0.000000e+00 : f32
      %56 = vector.broadcast %cst_35 : f32 to vector<2x8x4xf32>
      %c0_36 = arith.constant 0 : index
      %c0_37 = arith.constant 0 : index
      %c0_38 = arith.constant 0 : index
      %57 = vector.load %arg15[%c0_36, %c0_37, %c0_38] : memref<2x8x4xf32, #tpu.memory_space<vmem>>, vector<2x8x4xf32>
      tpu.vector_store %arg15[%c0_36, %c0_37, %c0_38], %56 {strides = array<i32>} : memref<2x8x4xf32, #tpu.memory_space<vmem>>, vector<2x8x4xf32>,
      %cst_39 = arith.constant 0.000000e+00 : f32
      %58 = vector.broadcast %cst_39 : f32 to vector<2x8x8xf32>
      %c0_40 = arith.constant 0 : index
      %c0_41 = arith.constant 0 : index
      %c0_42 = arith.constant 0 : index
      %59 = vector.load %arg16[%c0_40, %c0_41, %c0_42] : memref<2x8x8xf32, #tpu.memory_space<vmem>>, vector<2x8x8xf32>
      tpu.vector_store %arg16[%c0_40, %c0_41, %c0_42], %58 {strides = array<i32>} : memref<2x8x8xf32, #tpu.memory_space<vmem>>, vector<2x8x8xf32>,
      %cst_43 = arith.constant 0.000000e+00 : f32
      %60 = vector.broadcast %cst_43 : f32 to vector<1x128xf32>
      %c0_44 = arith.constant 0 : index
      %c0_45 = arith.constant 0 : index
      %61 = vector.load %arg17[%c0_44, %c0_45] : memref<1x128xf32, #tpu.memory_space<vmem>>, vector<1x128xf32>
      tpu.vector_store %arg17[%c0_44, %c0_45], %60 {strides = array<i32>} : memref<1x128xf32, #tpu.memory_space<vmem>>, vector<1x128xf32>,
    } else {
    }
    %c0 = arith.constant 0 : index
    %c0_1 = arith.constant 0 : index
    %c0_2 = arith.constant 0 : index
    %3 = vector.load %arg2[%c0, %c0_1, %c0_2] : memref<2x4x128xf32, #tpu.memory_space<vmem>>, vector<2x4x128xf32>
    %4 = arith.negf %3 : vector<2x4x128xf32>
    %5 = math.exp %4 : vector<2x4x128xf32>
    %cst = arith.constant 1.000000e+00 : f32
    %6 = vector.broadcast %cst : f32 to vector<2x4x128xf32>
    %7 = arith.addf %6, %5 : vector<2x4x128xf32>
    %8 = arith.divf %6, %7 : vector<2x4x128xf32>
    %cst_3 = arith.constant 9.99999974E-5 : f32
    %cst_4 = arith.constant 0.999899983 : f32
    %9 = vector.broadcast %cst_3 : f32 to vector<2x4x128xf32>
    %10 = arith.maximumf %9, %8 : vector<2x4x128xf32>
    %11 = vector.broadcast %cst_4 : f32 to vector<2x4x128xf32>
    %12 = arith.minimumf %11, %10 : vector<2x4x128xf32>
    %c0_5 = arith.constant 0 : index
    %c0_6 = arith.constant 0 : index
    %c0_7 = arith.constant 0 : index
    %13 = vector.load %arg3[%c0_5, %c0_6, %c0_7] : memref<2x4x128xf32, #tpu.memory_space<vmem>>, vector<2x4x128xf32>
    %cst_8 = arith.constant 1.000000e+00 : f32
    %14 = vector.broadcast %cst_8 : f32 to vector<2x4x128xf32>
    %15 = arith.subf %14, %13 : vector<2x4x128xf32>
    %16 = arith.mulf %15, %15 : vector<2x4x128xf32>
    %cst_9 = arith.constant 1.000000e+00 : f32
    %17 = vector.broadcast %cst_9 : f32 to vector<2x4x128xf32>
    %18 = arith.subf %17, %12 : vector<2x4x128xf32>
    %19 = math.log %18 : vector<2x4x128xf32>
    %20 = arith.mulf %19, %12 : vector<2x4x128xf32>
    %21 = arith.mulf %20, %12 : vector<2x4x128xf32>
    %22 = arith.mulf %16, %16 : vector<2x4x128xf32>
    %23 = arith.mulf %21, %22 : vector<2x4x128xf32>
    %24 = vector.shape_cast %23 : vector<2x4x128xf32> to vector<1x2x4x128xf32>
    %cst_10 = arith.constant dense<0.000000e+00> : vector<1xf32>
    %25 = vector.multi_reduction <add>, %24, %cst_10 [1, 2, 3] : vector<1x2x4x128xf32> to vector<1xf32>
    %26 = vector.shape_cast %25 : vector<1xf32> to vector<1x1x1x1xf32>
    %27 = vector.extract %26[0, 0, 0, 0] : f32 from vector<1x1x1x1xf32>
    %c0_11 = arith.constant 0 : index
    %c0_12 = arith.constant 0 : index
    %28 = vector.load %arg17[%c0_11, %c0_12] : memref<1x128xf32, #tpu.memory_space<vmem>>, vector<1x128xf32>
    %29 = vector.broadcast %27 : f32 to vector<1x128xf32>
    %30 = arith.addf %28, %29 : vector<1x128xf32>
    %c0_13 = arith.constant 0 : index
    %c0_14 = arith.constant 0 : index
    %31 = vector.load %arg17[%c0_13, %c0_14] : memref<1x128xf32, #tpu.memory_space<vmem>>, vector<1x128xf32>
    tpu.vector_store %arg17[%c0_13, %c0_14], %30 {strides = array<i32>} : memref<1x128xf32, #tpu.memory_space<vmem>>, vector<1x128xf32>,
    %c2_i32 = arith.constant 2 : i32
    %32 = arith.muli %arg0, %c2_i32 : i32
    %33 = arith.addi %32, %arg1 : i32
    %c128_i32 = arith.constant 128 : i32
    %34 = arith.muli %33, %c128_i32 : i32
    %c0_15 = arith.constant 0 : index
    %c0_16 = arith.constant 0 : index
    %35 = vector.load %arg5[%c0_15, %c0_16] : memref<2x8xi32, #tpu.memory_space<vmem>>, vector<2x8xi32>
    %36 = tpu.iota {dimensions = array<i32: 2>} : vector<2x8x128xi32>
    %37 = vector.broadcast %34 : i32 to vector<2x8x128xi32>
    %38 = arith.addi %36, %37 : vector<2x8x128xi32>
    %39 = vector.shape_cast %35 : vector<2x8xi32> to vector<2x8x1xi32>
    %40 = vector.broadcast %39 : vector<2x8x1xi32> to vector<2x8x128xi32>
    %41 = arith.cmpi eq, %40, %38 : vector<2x8x128xi32>
    %42 = arith.extui %41 : vector<2x8x128xi1> to vector<2x8x128xi32>
    %43 = arith.sitofp %42 : vector<2x8x128xi32> to vector<2x8x128xf32>
    %c0_17 = arith.constant 0 : index
    %c0_18 = arith.constant 0 : index
    %c0_19 = arith.constant 0 : index
    %44 = vector.load %arg15[%c0_17, %c0_18, %c0_19] : memref<2x8x4xf32, #tpu.memory_space<vmem>>, vector<2x8x4xf32>
    "tpu.trace_start"() <{level = 10 : i32, message = "bmt,bct->bmc"}> : () -> ()
    %cst_20 = arith.constant dense<0.000000e+00> : vector<2x8x4xf32>
    %45 = tpu.matmul %43, %12, %cst_20 {dimension_numbers = #tpu.dot_dimension_numbers<[2], [2], [1], [1], [0, 0, 0, 1, 1, 1], [0], [0]>} : vector<2x8x128xf32>, vector<2x4x128xf32>, vector<2x8x4xf32> -> vector<2x8x4xf32>
    "tpu.trace_stop"() : () -> ()
    %46 = arith.addf %44, %45 : vector<2x8x4xf32>
    %c0_21 = arith.constant 0 : index
    %c0_22 = arith.constant 0 : index
    %c0_23 = arith.constant 0 : index
    %47 = vector.load %arg15[%c0_21, %c0_22, %c0_23] : memref<2x8x4xf32, #tpu.memory_space<vmem>>, vector<2x8x4xf32>
    tpu.vector_store %arg15[%c0_21, %c0_22, %c0_23], %46 {strides = array<i32>} : memref<2x8x4xf32, #tpu.memory_space<vmem>>, vector<2x8x4xf32>,
    %c0_24 = arith.constant 0 : index
    %c0_25 = arith.constant 0 : index
    %c0_26 = arith.constant 0 : index
    %48 = vector.load %arg16[%c0_24, %c0_25, %c0_26] : memref<2x8x8xf32, #tpu.memory_space<vmem>>, vector<2x8x8xf32>
    %c0_27 = arith.constant 0 : index
    %c0_28 = arith.constant 0 : index
    %c0_29 = arith.constant 0 : index
    %49 = vector.load %arg4[%c0_27, %c0_28, %c0_29] : memref<2x8x128xf32, #tpu.memory_space<vmem>>, vector<2x8x128xf32>
    "tpu.trace_start"() <{level = 10 : i32, message = "bmt,bct->bmc"}> : () -> ()
    %cst_30 = arith.constant dense<0.000000e+00> : vector<2x8x8xf32>
    %50 = tpu.matmul %43, %49, %cst_30 {dimension_numbers = #tpu.dot_dimension_numbers<[2], [2], [1], [1], [0, 0, 0, 1, 1, 1], [0], [0]>} : vector<2x8x128xf32>, vector<2x8x128xf32>, vector<2x8x8xf32> -> vector<2x8x8xf32>
    "tpu.trace_stop"() : () -> ()
    %51 = arith.addf %48, %50 : vector<2x8x8xf32>
    %c0_31 = arith.constant 0 : index
    %c0_32 = arith.constant 0 : index
    %c0_33 = arith.constant 0 : index
    %52 = vector.load %arg16[%c0_31, %c0_32, %c0_33] : memref<2x8x8xf32, #tpu.memory_space<vmem>>, vector<2x8x8xf32>
    tpu.vector_store %arg16[%c0_31, %c0_32, %c0_33], %51 {strides = array<i32>} : memref<2x8x8xf32, #tpu.memory_space<vmem>>, vector<2x8x8xf32>,
    %c1_i32 = arith.constant 1 : i32
    %53 = arith.cmpi eq, %arg1, %c1_i32 : i32
    %54 = arith.extui %53 : i1 to i32
    %c0_i32_34 = arith.constant 0 : i32
    %55 = arith.cmpi ne, %54, %c0_i32_34 : i32
    scf.if %55 {
      %c0_35 = arith.constant 0 : index
      %c0_36 = arith.constant 0 : index
      %56 = vector.load %arg6[%c0_35, %c0_36] : memref<2x8xi32, #tpu.memory_space<vmem>>, vector<2x8xi32>
      %c0_37 = arith.constant 0 : index
      %c0_38 = arith.constant 0 : index
      %57 = vector.load %arg7[%c0_37, %c0_38] : memref<2x8xf32, #tpu.memory_space<vmem>>, vector<2x8xf32>
      %c256_i32 = arith.constant 256 : i32
      %58 = arith.muli %arg0, %c256_i32 : i32
      %59 = vector.broadcast %58 : i32 to vector<2x8xi32>
      %60 = arith.cmpi sge, %35, %59 : vector<2x8xi32>
      %c256_i32_39 = arith.constant 256 : i32
      %61 = arith.addi %58, %c256_i32_39 : i32
      %62 = vector.broadcast %61 : i32 to vector<2x8xi32>
      %63 = arith.cmpi slt, %35, %62 : vector<2x8xi32>
      %64 = arith.andi %60, %63 : vector<2x8xi1>
      %65 = arith.extui %64 : vector<2x8xi1> to vector<2x8xi32>
      %66 = arith.sitofp %65 : vector<2x8xi32> to vector<2x8xf32>
      %67 = tpu.iota {dimensions = array<i32: 2>} : vector<2x8x4xi32>
      %68 = vector.shape_cast %56 : vector<2x8xi32> to vector<2x8x1xi32>
      %69 = vector.broadcast %68 : vector<2x8x1xi32> to vector<2x8x4xi32>
      %70 = arith.cmpi eq, %69, %67 : vector<2x8x4xi32>
      %71 = arith.extui %70 : vector<2x8x4xi1> to vector<2x8x4xi32>
      %72 = arith.sitofp %71 : vector<2x8x4xi32> to vector<2x8x4xf32>
      %c0_40 = arith.constant 0 : index
      %c0_41 = arith.constant 0 : index
      %c0_42 = arith.constant 0 : index
      %73 = vector.load %arg15[%c0_40, %c0_41, %c0_42] : memref<2x8x4xf32, #tpu.memory_space<vmem>>, vector<2x8x4xf32>
      %74 = arith.mulf %73, %72 : vector<2x8x4xf32>
      %cst_43 = arith.constant dense<0.000000e+00> : vector<2x8xf32>
      %75 = vector.multi_reduction <add>, %74, %cst_43 [2] : vector<2x8x4xf32> to vector<2x8xf32>
      %76 = arith.mulf %57, %66 : vector<2x8xf32>
      %cst_44 = arith.constant 0.000000e+00 : f32
      %77 = vector.broadcast %cst_44 : f32 to vector<2x8xf32>
      %78 = arith.cmpf ogt, %76, %77 : vector<2x8xf32>
      %cst_45 = arith.constant 1.000000e+00 : f32
      %79 = vector.broadcast %cst_45 : f32 to vector<2x8xf32>
      %80 = arith.select %78, %75, %79 : vector<2x8xi1>, vector<2x8xf32>
      %cst_46 = arith.constant 1.000000e+00 : f32
      %81 = vector.broadcast %cst_46 : f32 to vector<2x8xf32>
      %82 = arith.subf %81, %80 : vector<2x8xf32>
      %83 = math.log %80 : vector<2x8xf32>
      %84 = arith.mulf %83, %82 : vector<2x8xf32>
      %85 = arith.mulf %84, %82 : vector<2x8xf32>
      %86 = arith.mulf %85, %76 : vector<2x8xf32>
      %87 = vector.shape_cast %86 : vector<2x8xf32> to vector<1x2x8xf32>
      %cst_47 = arith.constant dense<0.000000e+00> : vector<1xf32>
      %88 = vector.multi_reduction <add>, %87, %cst_47 [1, 2] : vector<1x2x8xf32> to vector<1xf32>
      %89 = vector.shape_cast %88 : vector<1xf32> to vector<1x1x1xf32>
      %90 = vector.extract %89[0, 0, 0] : f32 from vector<1x1x1xf32>
      %91 = vector.shape_cast %57 : vector<2x8xf32> to vector<1x2x8xf32>
      %cst_48 = arith.constant dense<0.000000e+00> : vector<1xf32>
      %92 = vector.multi_reduction <add>, %91, %cst_48 [1, 2] : vector<1x2x8xf32> to vector<1xf32>
      %93 = vector.shape_cast %92 : vector<1xf32> to vector<1x1x1xf32>
      %94 = vector.extract %93[0, 0, 0] : f32 from vector<1x1x1xf32>
      %c0_49 = arith.constant 0 : index
      %c0_50 = arith.constant 0 : index
      %95 = vector.load %arg17[%c0_49, %c0_50] : memref<1x128xf32, #tpu.memory_space<vmem>>, vector<1x128xf32>
      %96 = vector.shape_cast %95 : vector<1x128xf32> to vector<1x1x128xf32>
      %cst_51 = arith.constant dense<0.000000e+00> : vector<1xf32>
      %97 = vector.multi_reduction <add>, %96, %cst_51 [1, 2] : vector<1x1x128xf32> to vector<1xf32>
      %98 = vector.shape_cast %97 : vector<1xf32> to vector<1x1x1xf32>
      %99 = vector.extract %98[0, 0, 0] : f32 from vector<1x1x1xf32>
      %cst_52 = arith.constant 7.812500e-03 : f32
      %100 = arith.mulf %99, %cst_52 : f32
      %cst_53 = arith.constant 0.000000e+00 : f32
      %101 = arith.cmpf ogt, %94, %cst_53 : f32
      %102 = arith.addf %90, %100 : f32
      %cst_54 = arith.constant 0.000000e+00 : f32
      %103 = arith.subf %cst_54, %102 : f32
      %cst_55 = arith.constant 1.000000e+00 : f32
      %104 = arith.maximumf %94, %cst_55 : f32
      %105 = arith.divf %103, %104 : f32
      %cst_56 = arith.constant 0.000000e+00 : f32
      %106 = arith.subf %cst_56, %100 : f32
      %107 = arith.select %101, %105, %106 : f32
      %cst_57 = arith.constant 1.000000e+00 : f32
      %108 = arith.divf %107, %cst_57 : f32
      %c0_58 = arith.constant 0 : index
      %c0_59 = arith.constant 0 : index
      %c0_60 = arith.constant 0 : index
      %109 = vector.load %arg16[%c0_58, %c0_59, %c0_60] : memref<2x8x8xf32, #tpu.memory_space<vmem>>, vector<2x8x8xf32>
      %110 = vector.extract_strided_slice %109 {offsets = [0, 0, 0], sizes = [2, 8, 2], strides = [1, 1, 1]} : vector<2x8x8xf32> to vector<2x8x2xf32>
      %c0_61 = arith.constant 0 : index
      %c0_62 = arith.constant 0 : index
      %c0_63 = arith.constant 0 : index
      %111 = vector.load %arg9[%c0_61, %c0_62, %c0_63] : memref<2x8x2xf32, #tpu.memory_space<vmem>>, vector<2x8x2xf32>
      %c0_64 = arith.constant 0 : index
      %c0_65 = arith.constant 0 : index
      %c0_66 = arith.constant 0 : index
      %112 = vector.load %arg8[%c0_64, %c0_65, %c0_66] : memref<2x8x2xf32, #tpu.memory_space<vmem>>, vector<2x8x2xf32>
      %113 = arith.mulf %110, %111 : vector<2x8x2xf32>
      %114 = arith.mulf %112, %111 : vector<2x8x2xf32>
      %115 = arith.subf %113, %114 : vector<2x8x2xf32>
      %116 = math.absf %115 : vector<2x8x2xf32>
      %117 = vector.shape_cast %66 : vector<2x8xf32> to vector<2x8x1xf32>
      %118 = vector.broadcast %117 : vector<2x8x1xf32> to vector<2x8x2xf32>
      %119 = arith.mulf %116, %118 : vector<2x8x2xf32>
      %120 = vector.shape_cast %119 : vector<2x8x2xf32> to vector<1x2x8x2xf32>
      %cst_67 = arith.constant dense<0.000000e+00> : vector<1xf32>
      %121 = vector.multi_reduction <add>, %120, %cst_67 [1, 2, 3] : vector<1x2x8x2xf32> to vector<1xf32>
      %122 = vector.shape_cast %121 : vector<1xf32> to vector<1x1x1x1xf32>
      %123 = vector.extract %122[0, 0, 0, 0] : f32 from vector<1x1x1x1xf32>
      %124 = vector.shape_cast %111 : vector<2x8x2xf32> to vector<1x2x8x2xf32>
      %cst_68 = arith.constant dense<0.000000e+00> : vector<1xf32>
      %125 = vector.multi_reduction <add>, %124, %cst_68 [1, 2, 3] : vector<1x2x8x2xf32> to vector<1xf32>
      %126 = vector.shape_cast %125 : vector<1xf32> to vector<1x1x1x1xf32>
      %127 = vector.extract %126[0, 0, 0, 0] : f32 from vector<1x1x1x1xf32>
      %cst_69 = arith.constant 9.99999974E-5 : f32
      %128 = arith.addf %127, %cst_69 : f32
      %129 = arith.divf %123, %128 : f32
      %cst_70 = arith.constant 1.000000e+00 : f32
      %130 = arith.divf %129, %cst_70 : f32
      %131 = vector.extract_strided_slice %109 {offsets = [0, 0, 2], sizes = [2, 8, 2], strides = [1, 1, 1]} : vector<2x8x8xf32> to vector<2x8x2xf32>
      %c0_71 = arith.constant 0 : index
      %c0_72 = arith.constant 0 : index
      %c0_73 = arith.constant 0 : index
      %132 = vector.load %arg11[%c0_71, %c0_72, %c0_73] : memref<2x8x2xf32, #tpu.memory_space<vmem>>, vector<2x8x2xf32>
      %c0_74 = arith.constant 0 : index
      %c0_75 = arith.constant 0 : index
      %c0_76 = arith.constant 0 : index
      %133 = vector.load %arg10[%c0_74, %c0_75, %c0_76] : memref<2x8x2xf32, #tpu.memory_space<vmem>>, vector<2x8x2xf32>
      %134 = arith.mulf %131, %132 : vector<2x8x2xf32>
      %135 = arith.mulf %133, %132 : vector<2x8x2xf32>
      %136 = arith.subf %134, %135 : vector<2x8x2xf32>
      %137 = math.absf %136 : vector<2x8x2xf32>
      %138 = vector.shape_cast %66 : vector<2x8xf32> to vector<2x8x1xf32>
      %139 = vector.broadcast %138 : vector<2x8x1xf32> to vector<2x8x2xf32>
      %140 = arith.mulf %137, %139 : vector<2x8x2xf32>
      %141 = vector.shape_cast %140 : vector<2x8x2xf32> to vector<1x2x8x2xf32>
      %cst_77 = arith.constant dense<0.000000e+00> : vector<1xf32>
      %142 = vector.multi_reduction <add>, %141, %cst_77 [1, 2, 3] : vector<1x2x8x2xf32> to vector<1xf32>
      %143 = vector.shape_cast %142 : vector<1xf32> to vector<1x1x1x1xf32>
      %144 = vector.extract %143[0, 0, 0, 0] : f32 from vector<1x1x1x1xf32>
      %145 = vector.shape_cast %132 : vector<2x8x2xf32> to vector<1x2x8x2xf32>
      %cst_78 = arith.constant dense<0.000000e+00> : vector<1xf32>
      %146 = vector.multi_reduction <add>, %145, %cst_78 [1, 2, 3] : vector<1x2x8x2xf32> to vector<1xf32>
      %147 = vector.shape_cast %146 : vector<1xf32> to vector<1x1x1x1xf32>
      %148 = vector.extract %147[0, 0, 0, 0] : f32 from vector<1x1x1x1xf32>
      %cst_79 = arith.constant 9.99999974E-5 : f32
      %149 = arith.addf %148, %cst_79 : f32
      %150 = arith.divf %144, %149 : f32
      %cst_80 = arith.constant 1.000000e+00 : f32
      %151 = arith.divf %150, %cst_80 : f32
      %152 = vector.extract_strided_slice %109 {offsets = [0, 0, 4], sizes = [2, 8, 4], strides = [1, 1, 1]} : vector<2x8x8xf32> to vector<2x8x4xf32>
      %c0_81 = arith.constant 0 : index
      %c0_82 = arith.constant 0 : index
      %c0_83 = arith.constant 0 : index
      %153 = vector.load %arg13[%c0_81, %c0_82, %c0_83] : memref<2x8x4xf32, #tpu.memory_space<vmem>>, vector<2x8x4xf32>
      %c0_84 = arith.constant 0 : index
      %c0_85 = arith.constant 0 : index
      %c0_86 = arith.constant 0 : index
      %154 = vector.load %arg12[%c0_84, %c0_85, %c0_86] : memref<2x8x4xf32, #tpu.memory_space<vmem>>, vector<2x8x4xf32>
      %155 = arith.mulf %152, %153 : vector<2x8x4xf32>
      %156 = arith.mulf %154, %153 : vector<2x8x4xf32>
      %157 = arith.subf %155, %156 : vector<2x8x4xf32>
      %158 = math.absf %157 : vector<2x8x4xf32>
      %159 = vector.shape_cast %66 : vector<2x8xf32> to vector<2x8x1xf32>
      %160 = vector.broadcast %159 : vector<2x8x1xf32> to vector<2x8x4xf32>
      %161 = arith.mulf %158, %160 : vector<2x8x4xf32>
      %162 = vector.shape_cast %161 : vector<2x8x4xf32> to vector<1x2x8x4xf32>
      %cst_87 = arith.constant dense<0.000000e+00> : vector<1xf32>
      %163 = vector.multi_reduction <add>, %162, %cst_87 [1, 2, 3] : vector<1x2x8x4xf32> to vector<1xf32>
      %164 = vector.shape_cast %163 : vector<1xf32> to vector<1x1x1x1xf32>
      %165 = vector.extract %164[0, 0, 0, 0] : f32 from vector<1x1x1x1xf32>
      %166 = vector.shape_cast %153 : vector<2x8x4xf32> to vector<1x2x8x4xf32>
      %cst_88 = arith.constant dense<0.000000e+00> : vector<1xf32>
      %167 = vector.multi_reduction <add>, %166, %cst_88 [1, 2, 3] : vector<1x2x8x4xf32> to vector<1xf32>
      %168 = vector.shape_cast %167 : vector<1xf32> to vector<1x1x1x1xf32>
      %169 = vector.extract %168[0, 0, 0, 0] : f32 from vector<1x1x1x1xf32>
      %cst_89 = arith.constant 9.99999974E-5 : f32
      %170 = arith.addf %169, %cst_89 : f32
      %171 = arith.divf %165, %170 : f32
      %cst_90 = arith.constant 1.000000e+00 : f32
      %172 = arith.divf %171, %cst_90 : f32
      %cst_91 = arith.constant 1.000000e+00 : f32
      %173 = arith.mulf %cst_91, %108 : f32
      %cst_92 = arith.constant 1.000000e+00 : f32
      %174 = arith.mulf %cst_92, %130 : f32
      %175 = arith.addf %173, %174 : f32
      %cst_93 = arith.constant 1.000000e+00 : f32
      %176 = arith.mulf %cst_93, %151 : f32
      %177 = arith.addf %175, %176 : f32
      %cst_94 = arith.constant 1.000000e-01 : f32
      %178 = arith.mulf %cst_94, %172 : f32
      %179 = arith.addf %177, %178 : f32
      %180 = vector.broadcast %108 : f32 to vector<1x128xf32>
      %181 = vector.broadcast %130 : f32 to vector<1x128xf32>
      %182 = vector.broadcast %151 : f32 to vector<1x128xf32>
      %183 = vector.broadcast %172 : f32 to vector<1x128xf32>
      %184 = vector.broadcast %179 : f32 to vector<1x128xf32>
      %cst_95 = arith.constant 0.000000e+00 : f32
      %185 = vector.broadcast %cst_95 : f32 to vector<1x128xf32>
      %cst_96 = arith.constant 0.000000e+00 : f32
      %186 = vector.broadcast %cst_96 : f32 to vector<1x128xf32>
      %cst_97 = arith.constant 0.000000e+00 : f32
      %187 = vector.broadcast %cst_97 : f32 to vector<1x128xf32>
      %188 = tpu.concatenate %180, %181, %182, %183, %184, %185, %186, %187 in 0 : vector<1x128xf32>, vector<1x128xf32>, vector<1x128xf32>, vector<1x128xf32>, vector<1x128xf32>, vector<1x128xf32>, vector<1x128xf32>, vector<1x128xf32> -> vector<8x128xf32>
      %189 = vector.shape_cast %188 : vector<8x128xf32> to vector<1x8x128xf32>
      %c0_98 = arith.constant 0 : index
      %c0_99 = arith.constant 0 : index
      %c0_100 = arith.constant 0 : index
      %190 = vector.load %arg14[%c0_98, %c0_99, %c0_100] : memref<1x8x128xf32, #tpu.memory_space<vmem>>, vector<1x8x128xf32>
      tpu.vector_store %arg14[%c0_98, %c0_99, %c0_100], %189 {strides = array<i32>} : memref<1x8x128xf32, #tpu.memory_space<vmem>>, vector<1x8x128xf32>,
    } else {
    }
    return
  }
  func.func @transform_0(%arg0: i32, %arg1: i32) -> (i32, i32, i32) {
    %c2_i32 = arith.constant 2 : i32
    %0 = arith.muli %arg0, %c2_i32 : i32
    %1 = arith.addi %0, %arg1 : i32
    %c0_i32 = arith.constant 0 : i32
    %c0_i32_0 = arith.constant 0 : i32
    %c0_i32_1 = arith.constant 0 : i32
    return %c0_i32, %c0_i32_0, %1 : i32, i32, i32
  }
  func.func @transform_1(%arg0: i32, %arg1: i32) -> (i32, i32, i32) {
    %c2_i32 = arith.constant 2 : i32
    %0 = arith.muli %arg0, %c2_i32 : i32
    %1 = arith.addi %0, %arg1 : i32
    %c0_i32 = arith.constant 0 : i32
    %c0_i32_0 = arith.constant 0 : i32
    %c0_i32_1 = arith.constant 0 : i32
    return %c0_i32, %c0_i32_0, %1 : i32, i32, i32
  }
  func.func @transform_2(%arg0: i32, %arg1: i32) -> (i32, i32, i32) {
    %c2_i32 = arith.constant 2 : i32
    %0 = arith.muli %arg0, %c2_i32 : i32
    %1 = arith.addi %0, %arg1 : i32
    %c0_i32 = arith.constant 0 : i32
    %c0_i32_0 = arith.constant 0 : i32
    %c0_i32_1 = arith.constant 0 : i32
    return %c0_i32, %c0_i32_0, %1 : i32, i32, i32
  }
  func.func @transform_3(%arg0: i32, %arg1: i32) -> (i32, i32) {
    %c0_i32 = arith.constant 0 : i32
    %c0_i32_0 = arith.constant 0 : i32
    %c0_i32_1 = arith.constant 0 : i32
    return %c0_i32, %c0_i32_0 : i32, i32
  }
  func.func @transform_4(%arg0: i32, %arg1: i32) -> (i32, i32) {
    %c0_i32 = arith.constant 0 : i32
    %c0_i32_0 = arith.constant 0 : i32
    %c0_i32_1 = arith.constant 0 : i32
    return %c0_i32, %c0_i32_0 : i32, i32
  }
  func.func @transform_5(%arg0: i32, %arg1: i32) -> (i32, i32) {
    %c0_i32 = arith.constant 0 : i32
    %c0_i32_0 = arith.constant 0 : i32
    %c0_i32_1 = arith.constant 0 : i32
    return %c0_i32, %c0_i32_0 : i32, i32
  }
  func.func @transform_6(%arg0: i32, %arg1: i32) -> (i32, i32, i32) {
    %c0_i32 = arith.constant 0 : i32
    %c0_i32_0 = arith.constant 0 : i32
    %c0_i32_1 = arith.constant 0 : i32
    %c0_i32_2 = arith.constant 0 : i32
    return %c0_i32, %c0_i32_0, %c0_i32_1 : i32, i32, i32
  }
  func.func @transform_7(%arg0: i32, %arg1: i32) -> (i32, i32, i32) {
    %c0_i32 = arith.constant 0 : i32
    %c0_i32_0 = arith.constant 0 : i32
    %c0_i32_1 = arith.constant 0 : i32
    %c0_i32_2 = arith.constant 0 : i32
    return %c0_i32, %c0_i32_0, %c0_i32_1 : i32, i32, i32
  }
  func.func @transform_8(%arg0: i32, %arg1: i32) -> (i32, i32, i32) {
    %c0_i32 = arith.constant 0 : i32
    %c0_i32_0 = arith.constant 0 : i32
    %c0_i32_1 = arith.constant 0 : i32
    %c0_i32_2 = arith.constant 0 : i32
    return %c0_i32, %c0_i32_0, %c0_i32_1 : i32, i32, i32
  }
  func.func @transform_9(%arg0: i32, %arg1: i32) -> (i32, i32, i32) {
    %c0_i32 = arith.constant 0 : i32
    %c0_i32_0 = arith.constant 0 : i32
    %c0_i32_1 = arith.constant 0 : i32
    %c0_i32_2 = arith.constant 0 : i32
    return %c0_i32, %c0_i32_0, %c0_i32_1 : i32, i32, i32
  }
  func.func @transform_10(%arg0: i32, %arg1: i32) -> (i32, i32, i32) {
    %c0_i32 = arith.constant 0 : i32
    %c0_i32_0 = arith.constant 0 : i32
    %c0_i32_1 = arith.constant 0 : i32
    %c0_i32_2 = arith.constant 0 : i32
    return %c0_i32, %c0_i32_0, %c0_i32_1 : i32, i32, i32
  }
  func.func @transform_11(%arg0: i32, %arg1: i32) -> (i32, i32, i32) {
    %c0_i32 = arith.constant 0 : i32
    %c0_i32_0 = arith.constant 0 : i32
    %c0_i32_1 = arith.constant 0 : i32
    %c0_i32_2 = arith.constant 0 : i32
    return %c0_i32, %c0_i32_0, %c0_i32_1 : i32, i32, i32
  }
  func.func @transform_12(%arg0: i32, %arg1: i32) -> (i32, i32, i32) {
    %c0_i32 = arith.constant 0 : i32
    %c0_i32_0 = arith.constant 0 : i32
    %c0_i32_1 = arith.constant 0 : i32
    return %arg0, %c0_i32, %c0_i32_0 : i32, i32, i32
  }
}

</mosaic_0001>

<llo_original>
// kernel: tpu_custom_call.1
$region0: #{tpu_custom_call.1}
  #allocation0 [shape = 'u32[]', space=smem, size = 0x4, offset = 0x4, fixed_abs, tag = 'smem constant byte address 0x4 - core index']
  #allocation1 [shape = 'u32[144,128]{1,0:T(1,128)}', space=vmem, size = 0x12000, scoped, tag = 'internal scratch']
  #allocation2 [shape = 'f32[2,8,4]{2,1,0:T(8,128)}', space=vmem, size = 0x2000, scoped, tag = 'scratch operand']
  #allocation3 [shape = 'f32[2,8,8]{2,1,0:T(8,128)}', space=vmem, size = 0x2000, scoped, tag = 'scratch operand']
  #allocation4 [shape = 'f32[1,128]{1,0:T(1,128)}', space=vmem, size = 0x200, scoped, tag = 'scratch operand']
  %s0 = inlined_call_operand.hbm [shape: f32[2,4,512], index: 0, kind: input, shape index: {}]
  %s1 = inlined_call_operand.hbm [shape: f32[2,4,512], index: 1, kind: input, shape index: {}]
  %s2 = inlined_call_operand.hbm [shape: f32[2,8,512], index: 2, kind: input, shape index: {}]
  %s3 = inlined_call_operand.hbm [shape: s32[2,8], index: 3, kind: input, shape index: {}]
  %s4 = inlined_call_operand.hbm [shape: s32[2,8], index: 4, kind: input, shape index: {}]
  %s5 = inlined_call_operand.hbm [shape: f32[2,8], index: 5, kind: input, shape index: {}]
  %s6 = inlined_call_operand.hbm [shape: f32[2,8,2], index: 6, kind: input, shape index: {}]
  %s7 = inlined_call_operand.hbm [shape: f32[2,8,2], index: 7, kind: input, shape index: {}]
  %s8 = inlined_call_operand.hbm [shape: f32[2,8,2], index: 8, kind: input, shape index: {}]
  %s9 = inlined_call_operand.hbm [shape: f32[2,8,2], index: 9, kind: input, shape index: {}]
  %s10 = inlined_call_operand.hbm [shape: f32[2,8,4], index: 10, kind: input, shape index: {}]
  %s11 = inlined_call_operand.hbm [shape: f32[2,8,4], index: 11, kind: input, shape index: {}]
  %s12 = inlined_call_operand.hbm [shape: f32[2,8,128], index: 12, kind: output, shape index: {}]
  %s13 = sld [smem:[#allocation0]]
  $region137: #{tpu_custom_call.1} parent=0
    _
  %s15 = ssub.s32 1, %s13
  %s16 = scalar_select 0, %s15, %s13
  $region1: #{tpu_custom_call.1} parent=0
    #allocation5 [shape = 'u8[8192]{0}', space=vmem, size = 0x2000, scoped, tag = 'input window, operand 0']
    #allocation6 [shape = 's32[2]{0}', space=sflag, size = 0x8, scoped, tag = 'scoped memory for tpu_custom_call.1']
    #allocation7 [shape = 's32[2]{0}', space=sflag, size = 0x8, scoped, tag = 'scoped memory for tpu_custom_call.1']
    #allocation8 [shape = 'u8[8192]{0}', space=vmem, size = 0x2000, scoped, tag = 'input window, operand 1']
    #allocation9 [shape = 's32[2]{0}', space=sflag, size = 0x8, scoped, tag = 'scoped memory for tpu_custom_call.1']
    #allocation10 [shape = 'u8[16384]{0}', space=vmem, size = 0x4000, scoped, tag = 'input window, operand 2']
    #allocation11 [shape = 'u8[1024]{0}', space=vmem, size = 0x400, scoped, tag = 'input window, operand 3, single buffered']
    #allocation12 [shape = 's32[1]{0}', space=sflag, size = 0x4, scoped, tag = 'scoped memory for tpu_custom_call.1']
    #allocation13 [shape = 'u8[1024]{0}', space=vmem, size = 0x400, scoped, tag = 'input window, operand 4, single buffered']
    #allocation14 [shape = 'u8[1024]{0}', space=vmem, size = 0x400, scoped, tag = 'input window, operand 5, single buffered']
    #allocation15 [shape = 's32[1]{0}', space=sflag, size = 0x4, scoped, tag = 'scoped memory for tpu_custom_call.1']
    #allocation16 [shape = 'u8[8192]{0}', space=vmem, size = 0x2000, scoped, tag = 'input window, operand 6, single buffered']
    #allocation17 [shape = 'u8[8192]{0}', space=vmem, size = 0x2000, scoped, tag = 'input window, operand 7, single buffered']
    #allocation18 [shape = 's32[1]{0}', space=sflag, size = 0x4, scoped, tag = 'scoped memory for tpu_custom_call.1']
    #allocation19 [shape = 'u8[8192]{0}', space=vmem, size = 0x2000, scoped, tag = 'input window, operand 8, single buffered']
    #allocation20 [shape = 'u8[8192]{0}', space=vmem, size = 0x2000, scoped, tag = 'input window, operand 9, single buffered']
    #allocation21 [shape = 's32[1]{0}', space=sflag, size = 0x4, scoped, tag = 'scoped memory for tpu_custom_call.1']
    #allocation22 [shape = 'u8[8192]{0}', space=vmem, size = 0x2000, scoped, tag = 'input window, operand 10, single buffered']
    #allocation23 [shape = 'u8[8192]{0}', space=vmem, size = 0x2000, scoped, tag = 'input window, operand 11, single buffered']
    #allocation24 [shape = 's32[1]{0}', space=sflag, size = 0x4, scoped, tag = 'scoped memory for tpu_custom_call.1']
    #allocation25 [shape = 'u8[8192]{0}', space=vmem, size = 0x2000, scoped, tag = 'output window, operand 0']
    %17 = vsyncpa [#allocation6], 0
    %s18 = scalar_lea.sflag [#allocation6], 1
    %19 = vsyncpa %s18, 0
    %20 = vsyncpa [#allocation9], 0
    %s21 = scalar_lea.sflag [#allocation9], 1
    %22 = vsyncpa %s21, 0
    %23 = vsyncpa [#allocation12], 0
    %24 = vsyncpa [#allocation15], 0
    %25 = vsyncpa [#allocation18], 0
    %26 = vsyncpa [#allocation21], 0
    %27 = vsyncpa [#allocation24], 0
    %28 = vsyncpa [#allocation7], 0
    %s29 = scalar_lea.sflag [#allocation7], 1
    %30 = vsyncpa %s29, 0
    loop: start=0, step=1, limit=6
    $region2: #{tpu_custom_call.1} parent=1 // loop_pre_header
      _
    $region3: #{tpu_custom_call.1} parent=1 // loop_header
      %s32 = sphi 0, %s36
      %p33 = scmp.ge.s32.totalorder %s32, 6
      %s39 = sphi 0, %s51
      %s40 = sphi 0, %s47
      %s41 = sphi 0, %s39
      %s42 = sphi 0, %s40
      %s43 = sphi 0, %s41
      %s44 = sphi 0, %s42
      %s58 = sphi 0, %s60
      %s61 = sphi 0, %s58
      %s62 = sphi 0, %s61
      %s78 = sphi 0, %s62
      %s88 = sphi 0, %s90
      %s91 = sphi 0, %s88
      %s92 = sphi 0, %s91
      %s108 = sphi 0, %s92
      %s118 = sphi 0, %s120
      %s121 = sphi 0, %s118
      %s122 = sphi 0, %s121
      %s138 = sphi 0, %s122
      %s142 = sphi 0, %s142
      %s144 = sphi 0, %s142
      %s145 = sphi 0, %s144
      %s159 = sphi 0, %s145
      %s163 = sphi 0, %s163
      %s165 = sphi 0, %s163
      %s166 = sphi 0, %s165
      %s180 = sphi 0, %s166
      %s184 = sphi 0, %s184
      %s186 = sphi 0, %s184
      %s187 = sphi 0, %s186
      %s201 = sphi 0, %s187
      %s205 = sphi 0, %s205
      %s207 = sphi 0, %s205
      %s208 = sphi 0, %s207
      %s222 = sphi 0, %s208
      %s226 = sphi 0, %s226
      %s228 = sphi 0, %s226
      %s229 = sphi 0, %s228
      %s243 = sphi 0, %s229
      %s247 = sphi 0, %s247
      %s249 = sphi 0, %s247
      %s250 = sphi 0, %s249
      %s264 = sphi 0, %s250
      %s268 = sphi 0, %s268
      %s270 = sphi 0, %s268
      %s271 = sphi 0, %s270
      %s285 = sphi 0, %s271
      %s289 = sphi 0, %s289
      %s291 = sphi 0, %s289
      %s292 = sphi 0, %s291
      %s306 = sphi 0, %s292
      %s310 = sphi 0, %s310
      %s312 = sphi 0, %s310
      %s313 = sphi 0, %s312
      %s327 = sphi 0, %s313
      %s333 = sphi 0, %s335
      %s336 = sphi 0, %s333
      %s337 = sphi 0, %s336
      %s353 = sphi 0, %s337
    $region4: #{tpu_custom_call.1} parent=1 // loop_header_branch
      %35 = sbr.rel (%p33) target = $region8
    $region5: #{tpu_custom_call.1} parent=1 // loop_body
      %s37 = ssub.s32 %s32, 1
      %s38 = ssub.s32 %s32, 2
      %s45 = sadd.s32 1, %s40
      %p46 = scmp.ge.s32.totalorder %s45, 2
      %s47 = scalar_select %p46, 0, %s45
      %s48 = sadd.s32 1, %s39
      %s49 = scalar_select %p46, %s48, %s39
      %p50 = scmp.ge.s32.totalorder %s49, 2
      %s51 = scalar_select %p50, 0, %s49
      %s52 = smul.u32 %s39, 2
      %s53 = sadd.s32 %s52, %s40
      %s54 = smul.u32 %s51, 2
      %s55 = sadd.s32 %s54, %s47
      %s56 = ssub.s32 %s53, %s55
      %p57 = scmp.eq.s32.totalorder %s56, 0
      %s59 = sadd.s32 %s58, 1
      %s60 = scalar_select %p57, %s58, %s59
      %p63 = pneg %p57
      %p64 = scmp.eq.s32.totalorder %s32, 3
      %p65 = por %p63, %p64
      %p66 = scmp.ne.s32.totalorder %s58, %s61
      %p67 = scmp.eq.s32.totalorder %s32, 0
      %p68 = por %p66, %p67
      %p69 = scmp.ne.s32.totalorder %s58, %s61
      %p70 = scmp.eq.s32.totalorder %s37, 3
      %p71 = por %p69, %p70
      %p72 = scmp.ne.s32.totalorder %s61, %s62
      %p73 = scmp.eq.s32.totalorder %s37, 0
      %p74 = por %p72, %p73
      %p75 = scmp.ne.s32.totalorder %s61, %s62
      %p76 = scmp.eq.s32.totalorder %s38, 3
      %p77 = por %p75, %p76
      %p79 = scmp.ne.s32.totalorder %s62, %s78
      %p80 = scmp.eq.s32.totalorder %s38, 0
      %p81 = por %p79, %p80
      %s82 = smul.u32 %s39, 2
      %s83 = sadd.s32 %s82, %s40
      %s84 = smul.u32 %s51, 2
      %s85 = sadd.s32 %s84, %s47
      %s86 = ssub.s32 %s83, %s85
      %p87 = scmp.eq.s32.totalorder %s86, 0
      %s89 = sadd.s32 %s88, 1
      %s90 = scalar_select %p87, %s88, %s89
      %p93 = pneg %p87
      %p94 = scmp.eq.s32.totalorder %s32, 3
      %p95 = por %p93, %p94
      %p96 = scmp.ne.s32.totalorder %s88, %s91
      %p97 = scmp.eq.s32.totalorder %s32, 0
      %p98 = por %p96, %p97
      %p99 = scmp.ne.s32.totalorder %s88, %s91
      %p100 = scmp.eq.s32.totalorder %s37, 3
      %p101 = por %p99, %p100
      %p102 = scmp.ne.s32.totalorder %s91, %s92
      %p103 = scmp.eq.s32.totalorder %s37, 0
      %p104 = por %p102, %p103
      %p105 = scmp.ne.s32.totalorder %s91, %s92
      %p106 = scmp.eq.s32.totalorder %s38, 3
      %p107 = por %p105, %p106
      %p109 = scmp.ne.s32.totalorder %s92, %s108
      %p110 = scmp.eq.s32.totalorder %s38, 0
      %p111 = por %p109, %p110
      %s112 = smul.u32 %s39, 2
      %s113 = sadd.s32 %s112, %s40
      %s114 = smul.u32 %s51, 2
      %s115 = sadd.s32 %s114, %s47
      %s116 = ssub.s32 %s113, %s115
      %p117 = scmp.eq.s32.totalorder %s116, 0
      %s119 = sadd.s32 %s118, 1
      %s120 = scalar_select %p117, %s118, %s119
      %p123 = pneg %p117
      %p124 = scmp.eq.s32.totalorder %s32, 3
      %p125 = por %p123, %p124
      %p126 = scmp.ne.s32.totalorder %s118, %s121
      %p127 = scmp.eq.s32.totalorder %s32, 0
      %p128 = por %p126, %p127
      %p129 = scmp.ne.s32.totalorder %s118, %s121
      %p130 = scmp.eq.s32.totalorder %s37, 3
      %p131 = por %p129, %p130
      %p132 = scmp.ne.s32.totalorder %s121, %s122
      %p133 = scmp.eq.s32.totalorder %s37, 0
      %p134 = por %p132, %p133
      %p135 = scmp.ne.s32.totalorder %s121, %s122
      %p136 = scmp.eq.s32.totalorder %s38, 3
      %p137 = por %p135, %p136
      %p139 = scmp.ne.s32.totalorder %s122, %s138
      %p140 = scmp.eq.s32.totalorder %s38, 0
      %p141 = por %p139, %p140
      %s143 = sadd.s32 %s142, 1
      %p146 = scmp.eq.s32.totalorder %s32, 3
      %p147 = scmp.ne.s32.totalorder %s142, %s144
      %p148 = scmp.eq.s32.totalorder %s32, 0
      %p149 = por %p147, %p148
      %p150 = scmp.ne.s32.totalorder %s142, %s144
      %p151 = scmp.eq.s32.totalorder %s37, 3
      %p152 = por %p150, %p151
      %p153 = scmp.ne.s32.totalorder %s144, %s145
      %p154 = scmp.eq.s32.totalorder %s37, 0
      %p155 = por %p153, %p154
      %p156 = scmp.ne.s32.totalorder %s144, %s145
      %p157 = scmp.eq.s32.totalorder %s38, 3
      %p158 = por %p156, %p157
      %p160 = scmp.ne.s32.totalorder %s145, %s159
      %p161 = scmp.eq.s32.totalorder %s38, 0
      %p162 = por %p160, %p161
      %s164 = sadd.s32 %s163, 1
      %p167 = scmp.eq.s32.totalorder %s32, 3
      %p168 = scmp.ne.s32.totalorder %s163, %s165
      %p169 = scmp.eq.s32.totalorder %s32, 0
      %p170 = por %p168, %p169
      %p171 = scmp.ne.s32.totalorder %s163, %s165
      %p172 = scmp.eq.s32.totalorder %s37, 3
      %p173 = por %p171, %p172
      %p174 = scmp.ne.s32.totalorder %s165, %s166
      %p175 = scmp.eq.s32.totalorder %s37, 0
      %p176 = por %p174, %p175
      %p177 = scmp.ne.s32.totalorder %s165, %s166
      %p178 = scmp.eq.s32.totalorder %s38, 3
      %p179 = por %p177, %p178
      %p181 = scmp.ne.s32.totalorder %s166, %s180
      %p182 = scmp.eq.s32.totalorder %s38, 0
      %p183 = por %p181, %p182
      %s185 = sadd.s32 %s184, 1
      %p188 = scmp.eq.s32.totalorder %s32, 3
      %p189 = scmp.ne.s32.totalorder %s184, %s186
      %p190 = scmp.eq.s32.totalorder %s32, 0
      %p191 = por %p189, %p190
      %p192 = scmp.ne.s32.totalorder %s184, %s186
      %p193 = scmp.eq.s32.totalorder %s37, 3
      %p194 = por %p192, %p193
      %p195 = scmp.ne.s32.totalorder %s186, %s187
      %p196 = scmp.eq.s32.totalorder %s37, 0
      %p197 = por %p195, %p196
      %p198 = scmp.ne.s32.totalorder %s186, %s187
      %p199 = scmp.eq.s32.totalorder %s38, 3
      %p200 = por %p198, %p199
      %p202 = scmp.ne.s32.totalorder %s187, %s201
      %p203 = scmp.eq.s32.totalorder %s38, 0
      %p204 = por %p202, %p203
      %s206 = sadd.s32 %s205, 1
      %p209 = scmp.eq.s32.totalorder %s32, 3
      %p210 = scmp.ne.s32.totalorder %s205, %s207
      %p211 = scmp.eq.s32.totalorder %s32, 0
      %p212 = por %p210, %p211
      %p213 = scmp.ne.s32.totalorder %s205, %s207
      %p214 = scmp.eq.s32.totalorder %s37, 3
      %p215 = por %p213, %p214
      %p216 = scmp.ne.s32.totalorder %s207, %s208
      %p217 = scmp.eq.s32.totalorder %s37, 0
      %p218 = por %p216, %p217
      %p219 = scmp.ne.s32.totalorder %s207, %s208
      %p220 = scmp.eq.s32.totalorder %s38, 3
      %p221 = por %p219, %p220
      %p223 = scmp.ne.s32.totalorder %s208, %s222
      %p224 = scmp.eq.s32.totalorder %s38, 0
      %p225 = por %p223, %p224
      %s227 = sadd.s32 %s226, 1
      %p230 = scmp.eq.s32.totalorder %s32, 3
      %p231 = scmp.ne.s32.totalorder %s226, %s228
      %p232 = scmp.eq.s32.totalorder %s32, 0
      %p233 = por %p231, %p232
      %p234 = scmp.ne.s32.totalorder %s226, %s228
      %p235 = scmp.eq.s32.totalorder %s37, 3
      %p236 = por %p234, %p235
      %p237 = scmp.ne.s32.totalorder %s228, %s229
      %p238 = scmp.eq.s32.totalorder %s37, 0
      %p239 = por %p237, %p238
      %p240 = scmp.ne.s32.totalorder %s228, %s229
      %p241 = scmp.eq.s32.totalorder %s38, 3
      %p242 = por %p240, %p241
      %p244 = scmp.ne.s32.totalorder %s229, %s243
      %p245 = scmp.eq.s32.totalorder %s38, 0
      %p246 = por %p244, %p245
      %s248 = sadd.s32 %s247, 1
      %p251 = scmp.eq.s32.totalorder %s32, 3
      %p252 = scmp.ne.s32.totalorder %s247, %s249
      %p253 = scmp.eq.s32.totalorder %s32, 0
      %p254 = por %p252, %p253
      %p255 = scmp.ne.s32.totalorder %s247, %s249
      %p256 = scmp.eq.s32.totalorder %s37, 3
      %p257 = por %p255, %p256
      %p258 = scmp.ne.s32.totalorder %s249, %s250
      %p259 = scmp.eq.s32.totalorder %s37, 0
      %p260 = por %p258, %p259
      %p261 = scmp.ne.s32.totalorder %s249, %s250
      %p262 = scmp.eq.s32.totalorder %s38, 3
      %p263 = por %p261, %p262
      %p265 = scmp.ne.s32.totalorder %s250, %s264
      %p266 = scmp.eq.s32.totalorder %s38, 0
      %p267 = por %p265, %p266
      %s269 = sadd.s32 %s268, 1
      %p272 = scmp.eq.s32.totalorder %s32, 3
      %p273 = scmp.ne.s32.totalorder %s268, %s270
      %p274 = scmp.eq.s32.totalorder %s32, 0
      %p275 = por %p273, %p274
      %p276 = scmp.ne.s32.totalorder %s268, %s270
      %p277 = scmp.eq.s32.totalorder %s37, 3
      %p278 = por %p276, %p277
      %p279 = scmp.ne.s32.totalorder %s270, %s271
      %p280 = scmp.eq.s32.totalorder %s37, 0
      %p281 = por %p279, %p280
      %p282 = scmp.ne.s32.totalorder %s270, %s271
      %p283 = scmp.eq.s32.totalorder %s38, 3
      %p284 = por %p282, %p283
      %p286 = scmp.ne.s32.totalorder %s271, %s285
      %p287 = scmp.eq.s32.totalorder %s38, 0
      %p288 = por %p286, %p287
      %s290 = sadd.s32 %s289, 1
      %p293 = scmp.eq.s32.totalorder %s32, 3
      %p294 = scmp.ne.s32.totalorder %s289, %s291
      %p295 = scmp.eq.s32.totalorder %s32, 0
      %p296 = por %p294, %p295
      %p297 = scmp.ne.s32.totalorder %s289, %s291
      %p298 = scmp.eq.s32.totalorder %s37, 3
      %p299 = por %p297, %p298
      %p300 = scmp.ne.s32.totalorder %s291, %s292
      %p301 = scmp.eq.s32.totalorder %s37, 0
      %p302 = por %p300, %p301
      %p303 = scmp.ne.s32.totalorder %s291, %s292
      %p304 = scmp.eq.s32.totalorder %s38, 3
      %p305 = por %p303, %p304
      %p307 = scmp.ne.s32.totalorder %s292, %s306
      %p308 = scmp.eq.s32.totalorder %s38, 0
      %p309 = por %p307, %p308
      %s311 = sadd.s32 %s310, 1
      %p314 = scmp.eq.s32.totalorder %s32, 3
      %p315 = scmp.ne.s32.totalorder %s310, %s312
      %p316 = scmp.eq.s32.totalorder %s32, 0
      %p317 = por %p315, %p316
      %p318 = scmp.ne.s32.totalorder %s310, %s312
      %p319 = scmp.eq.s32.totalorder %s37, 3
      %p320 = por %p318, %p319
      %p321 = scmp.ne.s32.totalorder %s312, %s313
      %p322 = scmp.eq.s32.totalorder %s37, 0
      %p323 = por %p321, %p322
      %p324 = scmp.ne.s32.totalorder %s312, %s313
      %p325 = scmp.eq.s32.totalorder %s38, 3
      %p326 = por %p324, %p325
      %p328 = scmp.ne.s32.totalorder %s313, %s327
      %p329 = scmp.eq.s32.totalorder %s38, 0
      %p330 = por %p328, %p329
      %s331 = ssub.s32 %s39, %s51
      %p332 = scmp.eq.s32.totalorder %s331, 0
      %s334 = sadd.s32 %s333, 1
      %s335 = scalar_select %p332, %s333, %s334
      %p338 = pneg %p332
      %p339 = scmp.eq.s32.totalorder %s32, 3
      %p340 = por %p338, %p339
      %p341 = scmp.ne.s32.totalorder %s333, %s336
      %p342 = scmp.eq.s32.totalorder %s32, 0
      %p343 = por %p341, %p342
      %p344 = scmp.ne.s32.totalorder %s333, %s336
      %p345 = scmp.eq.s32.totalorder %s37, 3
      %p346 = por %p344, %p345
      %p347 = scmp.ne.s32.totalorder %s336, %s337
      %p348 = scmp.eq.s32.totalorder %s37, 0
      %p349 = por %p347, %p348
      %p350 = scmp.ne.s32.totalorder %s336, %s337
      %p351 = scmp.eq.s32.totalorder %s38, 3
      %p352 = por %p350, %p351
      %p354 = scmp.ne.s32.totalorder %s337, %s353
      %p355 = scmp.eq.s32.totalorder %s38, 0
      %p356 = por %p354, %p355
      %p357 = scmp.le.s32.totalorder 1, %s32
      %p358 = scmp.lt.s32.totalorder %s32, 5
      %p359 = pnand %p357, %p358
      %p360 = pneg %p359
      // Predicated region
      $region9: #{tpu_custom_call.1} parent=5 // pred_check
        _
      $region10: #{tpu_custom_call.1} parent=5 // pred_check_branch
        %362 = sbr.rel (%p359) target = $region12
      $region11: #{tpu_custom_call.1} parent=5 // pred_region
        %s363 = ssub.s32 %s32, 1
        // Predicated region
        $region13: #{tpu_custom_call.1} parent=11 // pred_check
          %p364 = pneg %p155
        $region14: #{tpu_custom_call.1} parent=11 // pred_check_branch
          %366 = sbr.rel (%p364) target = $region16
        $region15: #{tpu_custom_call.1} parent=11 // pred_region
          %s368 = ssub.s32 32, 32
          %369 = vsyncadd [#allocation12], %s368
          %s371 = sshll.u32 [#allocation11], 4
          %s372 = int_to_ptr.vmem [resolvable:$true] %s371
          %374 = dma.hbm_to_vmem [thread:$0]  %s3, 32, %s372, [#allocation12]
        $region16: #{tpu_custom_call.1} parent=11 // pred_fallthru
          _
        // Predicated region
        $region17: #{tpu_custom_call.1} parent=11 // pred_check
          %p375 = pneg %p176
        $region18: #{tpu_custom_call.1} parent=11 // pred_check_branch
          %377 = sbr.rel (%p375) target = $region20
        $region19: #{tpu_custom_call.1} parent=11 // pred_region
          %s379 = ssub.s32 32, 32
          %380 = vsyncadd [#allocation12], %s379
          %s382 = sshll.u32 [#allocation13], 4
          %s383 = int_to_ptr.vmem [resolvable:$true] %s382
          %385 = dma.hbm_to_vmem [thread:$0]  %s4, 32, %s383, [#allocation12]
        $region20: #{tpu_custom_call.1} parent=11 // pred_fallthru
          _
        // Predicated region
        $region21: #{tpu_custom_call.1} parent=11 // pred_check
          %p386 = pneg %p197
        $region22: #{tpu_custom_call.1} parent=11 // pred_check_branch
          %388 = sbr.rel (%p386) target = $region24
        $region23: #{tpu_custom_call.1} parent=11 // pred_region
          %s390 = ssub.s32 32, 32
          %391 = vsyncadd [#allocation15], %s390
          %s393 = sshll.u32 [#allocation14], 4
          %s394 = int_to_ptr.vmem [resolvable:$true] %s393
          %396 = dma.hbm_to_vmem [thread:$0]  %s5, 32, %s394, [#allocation15]
        $region24: #{tpu_custom_call.1} parent=11 // pred_fallthru
          _
        // Predicated region
        $region25: #{tpu_custom_call.1} parent=11 // pred_check
          %p397 = pneg %p218
        $region26: #{tpu_custom_call.1} parent=11 // pred_check_branch
          %399 = sbr.rel (%p397) target = $region28
        $region27: #{tpu_custom_call.1} parent=11 // pred_region
          %s401 = ssub.s32 256, 256
          %402 = vsyncadd [#allocation15], %s401
          %s403 = sshll.u32 [#allocation16], 4
          %s404 = int_to_ptr.vmem [resolvable:$true] %s403
          %409 = dma.hbm_to_vmem [thread:$0]  %s6, 256, %s404, [#allocation15], 128, 128, 8
        $region28: #{tpu_custom_call.1} parent=11 // pred_fallthru
          _
        // Predicated region
        $region29: #{tpu_custom_call.1} parent=11 // pred_check
          %p410 = pneg %p239
        $region30: #{tpu_custom_call.1} parent=11 // pred_check_branch
          %412 = sbr.rel (%p410) target = $region32
        $region31: #{tpu_custom_call.1} parent=11 // pred_region
          %s414 = ssub.s32 256, 256
          %415 = vsyncadd [#allocation18], %s414
          %s416 = sshll.u32 [#allocation17], 4
          %s417 = int_to_ptr.vmem [resolvable:$true] %s416
          %422 = dma.hbm_to_vmem [thread:$0]  %s7, 256, %s417, [#allocation18], 128, 128, 8
        $region32: #{tpu_custom_call.1} parent=11 // pred_fallthru
          _
        // Predicated region
        $region33: #{tpu_custom_call.1} parent=11 // pred_check
          %p423 = pneg %p260
        $region34: #{tpu_custom_call.1} parent=11 // pred_check_branch
          %425 = sbr.rel (%p423) target = $region36
        $region35: #{tpu_custom_call.1} parent=11 // pred_region
          %s427 = ssub.s32 256, 256
          %428 = vsyncadd [#allocation18], %s427
          %s429 = sshll.u32 [#allocation19], 4
          %s430 = int_to_ptr.vmem [resolvable:$true] %s429
          %435 = dma.hbm_to_vmem [thread:$0]  %s8, 256, %s430, [#allocation18], 128, 128, 8
        $region36: #{tpu_custom_call.1} parent=11 // pred_fallthru
          _
        // Predicated region
        $region37: #{tpu_custom_call.1} parent=11 // pred_check
          %p436 = pneg %p281
        $region38: #{tpu_custom_call.1} parent=11 // pred_check_branch
          %438 = sbr.rel (%p436) target = $region40
        $region39: #{tpu_custom_call.1} parent=11 // pred_region
          %s440 = ssub.s32 256, 256
          %441 = vsyncadd [#allocation21], %s440
          %s442 = sshll.u32 [#allocation20], 4
          %s443 = int_to_ptr.vmem [resolvable:$true] %s442
          %448 = dma.hbm_to_vmem [thread:$0]  %s9, 256, %s443, [#allocation21], 128, 128, 8
        $region40: #{tpu_custom_call.1} parent=11 // pred_fallthru
          _
        // Predicated region
        $region41: #{tpu_custom_call.1} parent=11 // pred_check
          %p449 = pneg %p302
        $region42: #{tpu_custom_call.1} parent=11 // pred_check_branch
          %451 = sbr.rel (%p449) target = $region44
        $region43: #{tpu_custom_call.1} parent=11 // pred_region
          %s453 = ssub.s32 256, 256
          %454 = vsyncadd [#allocation21], %s453
          %s455 = sshll.u32 [#allocation22], 4
          %s456 = int_to_ptr.vmem [resolvable:$true] %s455
          %461 = dma.hbm_to_vmem [thread:$0]  %s10, 256, %s456, [#allocation21], 128, 128, 8
        $region44: #{tpu_custom_call.1} parent=11 // pred_fallthru
          _
        // Predicated region
        $region45: #{tpu_custom_call.1} parent=11 // pred_check
          %p462 = pneg %p323
        $region46: #{tpu_custom_call.1} parent=11 // pred_check_branch
          %464 = sbr.rel (%p462) target = $region48
        $region47: #{tpu_custom_call.1} parent=11 // pred_region
          %s466 = ssub.s32 256, 256
          %467 = vsyncadd [#allocation24], %s466
          %s468 = sshll.u32 [#allocation23], 4
          %s469 = int_to_ptr.vmem [resolvable:$true] %s468
          %474 = dma.hbm_to_vmem [thread:$0]  %s11, 256, %s469, [#allocation24], 128, 128, 8
        $region48: #{tpu_custom_call.1} parent=11 // pred_fallthru
          _
      $region12: #{tpu_custom_call.1} parent=5 // pred_fallthru
        _
      %p475 = scmp.lt.s32.totalorder %s32, 4
      // Predicated region
      $region49: #{tpu_custom_call.1} parent=5 // pred_check
        %p476 = pneg %p475
      $region50: #{tpu_custom_call.1} parent=5 // pred_check_branch
        %478 = sbr.rel (%p476) target = $region52
      $region51: #{tpu_custom_call.1} parent=5 // pred_region
        // Predicated region
        $region53: #{tpu_custom_call.1} parent=51 // pred_check
          %p479 = pneg %p68
        $region54: #{tpu_custom_call.1} parent=51 // pred_check_branch
          %481 = sbr.rel (%p479) target = $region56
        $region55: #{tpu_custom_call.1} parent=51 // pred_region
          %s482 = sand.u32 %s58, 1
          %s483 = scalar_lea.sflag [#allocation6], %s482
          %s484 = sand.u32 %s58, 1
          %s485 = smul.addr %s484, 8
          %s486 = scalar_lea.vmem [#allocation5], %s485
          %s487 = smul.u32 %s39, 2
          %s488 = sadd.s32 %s487, %s40
          %s490 = ssub.s32 128, 128
          %491 = vsyncadd %s483, %s490
          %s492 = smul.addr %s488, 64
          %s493 = scalar_lea.hbm %s0, %s492
          %s494 = sshll.u32 %s486, 4
          %s495 = int_to_ptr.vmem [resolvable:$true] %s494
          %500 = dma.hbm_to_vmem [thread:$0]  %s493, 128, %s495, %s483, 256, 64, 4
        $region56: #{tpu_custom_call.1} parent=51 // pred_fallthru
          _
        // Predicated region
        $region57: #{tpu_custom_call.1} parent=51 // pred_check
          %p501 = pneg %p98
        $region58: #{tpu_custom_call.1} parent=51 // pred_check_branch
          %503 = sbr.rel (%p501) target = $region60
        $region59: #{tpu_custom_call.1} parent=51 // pred_region
          %s504 = sand.u32 %s32, 1
          %s505 = scalar_lea.sflag [#allocation9], %s504
          %s506 = sand.u32 %s88, 1
          %s507 = smul.addr %s506, 8
          %s508 = scalar_lea.vmem [#allocation8], %s507
          %s509 = smul.u32 %s39, 2
          %s510 = sadd.s32 %s509, %s40
          %s512 = ssub.s32 128, 128
          %513 = vsyncadd %s505, %s512
          %s514 = smul.addr %s510, 64
          %s515 = scalar_lea.hbm %s1, %s514
          %s516 = sshll.u32 %s508, 4
          %s517 = int_to_ptr.vmem [resolvable:$true] %s516
          %522 = dma.hbm_to_vmem [thread:$0]  %s515, 128, %s517, %s505, 256, 64, 4
        $region60: #{tpu_custom_call.1} parent=51 // pred_fallthru
          _
        // Predicated region
        $region61: #{tpu_custom_call.1} parent=51 // pred_check
          %p523 = pneg %p128
        $region62: #{tpu_custom_call.1} parent=51 // pred_check_branch
          %525 = sbr.rel (%p523) target = $region64
        $region63: #{tpu_custom_call.1} parent=51 // pred_region
          %s526 = sand.u32 %s32, 1
          %s527 = scalar_lea.sflag [#allocation9], %s526
          %s528 = sand.u32 %s118, 1
          %s529 = smul.addr %s528, 16
          %s530 = scalar_lea.vmem [#allocation10], %s529
          %s531 = smul.u32 %s39, 2
          %s532 = sadd.s32 %s531, %s40
          %s534 = ssub.s32 256, 256
          %535 = vsyncadd %s527, %s534
          %s536 = smul.addr %s532, 128
          %s537 = scalar_lea.hbm %s2, %s536
          %s538 = sshll.u32 %s530, 4
          %s539 = int_to_ptr.vmem [resolvable:$true] %s538
          %544 = dma.hbm_to_vmem [thread:$0]  %s537, 256, %s539, %s527, 512, 128, 8
        $region64: #{tpu_custom_call.1} parent=51 // pred_fallthru
          _
      $region52: #{tpu_custom_call.1} parent=5 // pred_fallthru
        _
      %p545 = scmp.le.s32.totalorder 1, %s32
      %p546 = scmp.lt.s32.totalorder %s32, 5
      %p547 = pnand %p545, %p546
      %p548 = pneg %p547
      // Predicated region
      $region65: #{tpu_custom_call.1} parent=5 // pred_check
        _
      $region66: #{tpu_custom_call.1} parent=5 // pred_check_branch
        %550 = sbr.rel (%p547) target = $region68
      $region67: #{tpu_custom_call.1} parent=5 // pred_region
        %s551 = ssub.s32 %s32, 1
        %s552 = sand.u32 %s61, 1
        %s553 = scalar_lea.sflag [#allocation6], %s552
        %s554 = sand.u32 %s61, 1
        %s555 = smul.addr %s554, 8
        %s556 = scalar_lea.vmem [#allocation5], %s555
        // Predicated region
        $region69: #{tpu_custom_call.1} parent=67 // pred_check
          %p557 = pneg %p74
        $region70: #{tpu_custom_call.1} parent=67 // pred_check_branch
          %559 = sbr.rel (%p557) target = $region72
        $region71: #{tpu_custom_call.1} parent=67 // pred_region
          %560 = dma.done %s553, 128
        $region72: #{tpu_custom_call.1} parent=67 // pred_fallthru
          _
        %s561 = sand.u32 %s37, 1
        %s562 = scalar_lea.sflag [#allocation9], %s561
        %s563 = sand.u32 %s91, 1
        %s564 = smul.addr %s563, 8
        %s565 = scalar_lea.vmem [#allocation8], %s564
        // Predicated region
        $region73: #{tpu_custom_call.1} parent=67 // pred_check
          %p566 = pneg %p104
        $region74: #{tpu_custom_call.1} parent=67 // pred_check_branch
          %568 = sbr.rel (%p566) target = $region76
        $region75: #{tpu_custom_call.1} parent=67 // pred_region
          %569 = dma.done %s562, 128
        $region76: #{tpu_custom_call.1} parent=67 // pred_fallthru
          _
        %s570 = sand.u32 %s37, 1
        %s571 = scalar_lea.sflag [#allocation9], %s570
        %s572 = sand.u32 %s121, 1
        %s573 = smul.addr %s572, 16
        %s574 = scalar_lea.vmem [#allocation10], %s573
        // Predicated region
        $region77: #{tpu_custom_call.1} parent=67 // pred_check
          %p575 = pneg %p134
        $region78: #{tpu_custom_call.1} parent=67 // pred_check_branch
          %577 = sbr.rel (%p575) target = $region80
        $region79: #{tpu_custom_call.1} parent=67 // pred_region
          %578 = dma.done %s571, 256
        $region80: #{tpu_custom_call.1} parent=67 // pred_fallthru
          _
        // Predicated region
        $region81: #{tpu_custom_call.1} parent=67 // pred_check
          %p579 = pneg %p155
        $region82: #{tpu_custom_call.1} parent=67 // pred_check_branch
          %581 = sbr.rel (%p579) target = $region84
        $region83: #{tpu_custom_call.1} parent=67 // pred_region
          %582 = dma.done [#allocation12], 32
        $region84: #{tpu_custom_call.1} parent=67 // pred_fallthru
          _
        // Predicated region
        $region85: #{tpu_custom_call.1} parent=67 // pred_check
          %p583 = pneg %p176
        $region86: #{tpu_custom_call.1} parent=67 // pred_check_branch
          %585 = sbr.rel (%p583) target = $region88
        $region87: #{tpu_custom_call.1} parent=67 // pred_region
          %586 = dma.done [#allocation12], 32
        $region88: #{tpu_custom_call.1} parent=67 // pred_fallthru
          _
        // Predicated region
        $region89: #{tpu_custom_call.1} parent=67 // pred_check
          %p587 = pneg %p197
        $region90: #{tpu_custom_call.1} parent=67 // pred_check_branch
          %589 = sbr.rel (%p587) target = $region92
        $region91: #{tpu_custom_call.1} parent=67 // pred_region
          %590 = dma.done [#allocation15], 32
        $region92: #{tpu_custom_call.1} parent=67 // pred_fallthru
          _
        // Predicated region
        $region93: #{tpu_custom_call.1} parent=67 // pred_check
          %p591 = pneg %p218
        $region94: #{tpu_custom_call.1} parent=67 // pred_check_branch
          %593 = sbr.rel (%p591) target = $region96
        $region95: #{tpu_custom_call.1} parent=67 // pred_region
          %594 = dma.done [#allocation15], 256
        $region96: #{tpu_custom_call.1} parent=67 // pred_fallthru
          _
        // Predicated region
        $region97: #{tpu_custom_call.1} parent=67 // pred_check
          %p595 = pneg %p239
        $region98: #{tpu_custom_call.1} parent=67 // pred_check_branch
          %597 = sbr.rel (%p595) target = $region100
        $region99: #{tpu_custom_call.1} parent=67 // pred_region
          %598 = dma.done [#allocation18], 256
        $region100: #{tpu_custom_call.1} parent=67 // pred_fallthru
          _
        // Predicated region
        $region101: #{tpu_custom_call.1} parent=67 // pred_check
          %p599 = pneg %p260
        $region102: #{tpu_custom_call.1} parent=67 // pred_check_branch
          %601 = sbr.rel (%p599) target = $region104
        $region103: #{tpu_custom_call.1} parent=67 // pred_region
          %602 = dma.done [#allocation18], 256
        $region104: #{tpu_custom_call.1} parent=67 // pred_fallthru
          _
        // Predicated region
        $region105: #{tpu_custom_call.1} parent=67 // pred_check
          %p603 = pneg %p281
        $region106: #{tpu_custom_call.1} parent=67 // pred_check_branch
          %605 = sbr.rel (%p603) target = $region108
        $region107: #{tpu_custom_call.1} parent=67 // pred_region
          %606 = dma.done [#allocation21], 256
        $region108: #{tpu_custom_call.1} parent=67 // pred_fallthru
          _
        // Predicated region
        $region109: #{tpu_custom_call.1} parent=67 // pred_check
          %p607 = pneg %p302
        $region110: #{tpu_custom_call.1} parent=67 // pred_check_branch
          %609 = sbr.rel (%p607) target = $region112
        $region111: #{tpu_custom_call.1} parent=67 // pred_region
          %610 = dma.done [#allocation21], 256
        $region112: #{tpu_custom_call.1} parent=67 // pred_fallthru
          _
        // Predicated region
        $region113: #{tpu_custom_call.1} parent=67 // pred_check
          %p611 = pneg %p323
        $region114: #{tpu_custom_call.1} parent=67 // pred_check_branch
          %613 = sbr.rel (%p611) target = $region116
        $region115: #{tpu_custom_call.1} parent=67 // pred_region
          %614 = dma.done [#allocation24], 256
        $region116: #{tpu_custom_call.1} parent=67 // pred_fallthru
          _
        %s615 = sand.u32 %s61, 1
        %s616 = scalar_lea.sflag [#allocation6], %s615
        %s617 = sand.u32 %s61, 1
        %s618 = smul.addr %s617, 8
        %s619 = scalar_lea.vmem [#allocation5], %s618
        %p620 = pneg %p74
        %p621 = pneg %p71
        %s622 = sand.u32 %s37, 1
        %s623 = scalar_lea.sflag [#allocation9], %s622
        %s624 = sand.u32 %s91, 1
        %s625 = smul.addr %s624, 8
        %s626 = scalar_lea.vmem [#allocation8], %s625
        %p627 = pneg %p104
        %p628 = pneg %p101
        %s629 = sand.u32 %s37, 1
        %s630 = scalar_lea.sflag [#allocation9], %s629
        %s631 = sand.u32 %s121, 1
        %s632 = smul.addr %s631, 16
        %s633 = scalar_lea.vmem [#allocation10], %s632
        %p634 = pneg %p134
        %p635 = pneg %p131
        %p636 = pneg %p155
        %p637 = pneg %p152
        %p638 = pneg %p176
        %p639 = pneg %p173
        %p640 = pneg %p197
        %p641 = pneg %p194
        %p642 = pneg %p218
        %p643 = pneg %p215
        %p644 = pneg %p239
        %p645 = pneg %p236
        %p646 = pneg %p260
        %p647 = pneg %p257
        %p648 = pneg %p281
        %p649 = pneg %p278
        %p650 = pneg %p302
        %p651 = pneg %p299
        %p652 = pneg %p323
        %p653 = pneg %p320
        %p654 = pneg %p349
        %p655 = pneg %p346
        %s656 = sand.u32 %s336, 1
        %s657 = scalar_lea.sflag [#allocation7], %s656
        %s658 = sand.u32 %s336, 1
        %s659 = smul.addr %s658, 8
        %s660 = scalar_lea.vmem [#allocation25], %s659
        %s661 = smul.u32 %s41, 2
        %s662 = sadd.s32 %s661, %s42
        %s663 = smul.u32 %s41, 2
        %s664 = sadd.s32 %s663, %s42
        %s665 = smul.u32 %s41, 2
        %s666 = sadd.s32 %s665, %s42
        %p667 = scmp.eq.s32.totalorder %s42, 0
        // Predicated region
        $region117: #{tpu_custom_call.1} parent=67 // pred_check
          %p668 = pneg %p667
        $region118: #{tpu_custom_call.1} parent=67 // pred_check_branch
          %670 = sbr.rel (%p668) target = $region120
        $region119: #{tpu_custom_call.1} parent=67 // pred_region
          %vm671 = vcmask 31744
          %672 = vst.msk [vmem:[#allocation2] sm:$0xff] %vm671, 0.0
          %673 = vst.msk [vmem:[#allocation2 + $0x8] sm:$0xff] %vm671, 0.0
          %vm674 = vcmask 64512
          %675 = vst.msk [vmem:[#allocation3] sm:$0xff] %vm674, 0.0
          %676 = vst.msk [vmem:[#allocation3 + $0x8] sm:$0xff] %vm674, 0.0
          %677 = vst [vmem:[#allocation4] sm:$0x1] 0.0
        $region120: #{tpu_custom_call.1} parent=67 // pred_fallthru
          _
        %v678 = vld [vmem:[%s556] sm:$0xf]
        %v679 = vld [vmem:[%s556 + $0x4] sm:$0xf]
        %v680 = vxor.u32 %v678, 2147483648
        %v681 = vxor.u32 %v679, 2147483648
        %v682 = vmul.f32 %v680, 1.442695
        %v683 = vpow.pop %v682
        %v684 = vmul.f32 %v681, 1.442695
        %v685 = vpow.pop %v684
        %v686 = vadd.f32 %v683, 1.0
        %v687 = vadd.f32 %v685, 1.0
        %v688 = vrcp.pop %v686
        %v689 = vmul.f32 1.0, %v688
        %v690 = vrcp.pop %v687
        %v691 = vmul.f32 1.0, %v690
        %v692 = vmax.f32 %v689, 0.0001
        %v693 = vmax.f32 %v691, 0.0001
        %v694 = vmin.f32 %v692, 0.9999
        %v695 = vmin.f32 %v693, 0.9999
        %v696 = vld [vmem:[%s565] sm:$0xf]
        %v697 = vld [vmem:[%s565 + $0x4] sm:$0xf]
        %v698 = vsub.f32 1.0, %v696
        %v699 = vsub.f32 1.0, %v697
        %v700 = vmul.f32 %v698, %v698
        %v701 = vmul.f32 %v699, %v699
        %v702 = vsub.f32 1.0, %v694
        %v703 = vsub.f32 1.0, %v695
        %v704 = vlog2.pop %v702
        %v705 = vmul.f32 %v704, 0.6931472
        %v706 = vlog2.pop %v703
        %v707 = vmul.f32 %v706, 0.6931472
        %v708 = vmul.f32 %v705, %v694
        %v709 = vmul.f32 %v707, %v695
        %v710 = vmul.f32 %v708, %v694
        %v711 = vmul.f32 %v709, %v695
        %v712 = vmul.f32 %v700, %v700
        %v713 = vmul.f32 %v701, %v701
        %v714 = vmul.f32 %v710, %v712
        %v715 = vmul.f32 %v711, %v713
        %vm716 = vcmask 1043456
        %v717 = vsel %vm716, %v714, 0.0
        %v718 = vsel %vm716, %v715, 0.0
        %v719 = vadd.f32 %v717, %v718
        %720 = vadd.xlane.f32.xlu0 %v719
        %v721 = vpop.xlane.xlu0 %720
        %v722 = vrot.slane %v721, 4
        %v723 = vadd.f32 %v721, %v722
        %v724 = vrot.slane %v723, 2
        %v725 = vadd.f32 %v723, %v724
        %v726 = vrot.slane %v725, 1
        %v727 = vadd.f32 %v725, %v726
        %s728 = vtos %v727
        %v729 = vld [vmem:[#allocation4] sm:$0x1]
        %v730 = vstv %s728
        %v731 = vadd.f32 %v729, %v730
        %732 = vst [vmem:[#allocation4] sm:$0x1] %v731
        %s733 = smul.u32 %s41, 2
        %s734 = sadd.s32 %s733, %s42
        %s735 = smul.u32 %s734, 128
        %v736 = vld [vmem:[#allocation11] sm:$0x3]
        %v737 = vlaneseq
        %v738 = vand.u32 %v737, 127
        %v739 = vstv %s735
        %v740 = vadd.s32 %v738, %v739
        %v741 = vlaneseq
        %v742 = vshrl.u32 %v741, 7
        %v743 = vsub.s32 0, %v742
        %v744 = vrot.slane %v736, %v743
        %746 = vbcast.lane.b32.xlu0 %v744, 256
        %v747 = vpop.permute.xlu0 %746
        %v748 = vlaneseq
        %v749 = vshrl.u32 %v748, 7
        %v750 = vsub.s32 1, %v749
        %v751 = vrot.slane %v736, %v750
        %753 = vbcast.lane.b32.xlu0 %v751, 256
        %v754 = vpop.permute.xlu0 %753
        %vm755 = vcmp.eq.s32.totalorder %v747, %v740
        %vm756 = vcmp.eq.s32.totalorder %v754, %v740
        %v757 = vsel %vm755, 1, 0
        %v758 = vsel %vm756, 1, 0
        %v759 = vcvt.s32.f32 %v757
        %v760 = vcvt.s32.f32 %v758
        %v761 = vld [vmem:[#allocation2] sm:$0xff]
        %v762 = vld [vmem:[#allocation2 + $0x8] sm:$0xff]
        %763 = vmatprep.subr.mxu0 0.0
        %764 = vmatpush1.xpose.msra.mxu0 %v694
        %765 = vmatprep.subr.mxu0 0.0
        %766 = vmatpush1.xpose.msra.mxu0 0.0
        %767 = vmatprep.subr.mxu0 0.0
        %768 = vmatpush1.xpose.msra.mxu0 0.0
        %769 = vmatprep.subr.mxu0 0.0
        %770 = vmatpush1.xpose.msra.mxu0 0.0
        %771 = vmatprep.subr.mxu0 0.0
        %772 = vmatpush1.xpose.msra.mxu0 0.0
        %773 = vmatprep.subr.mxu0 0.0
        %774 = vmatpush1.xpose.msra.mxu0 0.0
        %775 = vmatprep.subr.mxu0 0.0
        %776 = vmatpush1.xpose.msra.mxu0 0.0
        %777 = vmatprep.subr.mxu0 0.0
        %778 = vmatpush1.xpose.msra.mxu0 0.0
        %779 = vmatprep.subr.mxu0 0.0
        %780 = vmatpush1.xpose.msra.mxu0 0.0
        %781 = vmatprep.subr.mxu0 0.0
        %782 = vmatpush1.xpose.msra.mxu0 0.0
        %783 = vmatprep.subr.mxu0 0.0
        %784 = vmatpush1.xpose.msra.mxu0 0.0
        %785 = vmatprep.subr.mxu0 0.0
        %786 = vmatpush1.xpose.msra.mxu0 0.0
        %787 = vmatprep.subr.mxu0 0.0
        %788 = vmatpush1.xpose.msra.mxu0 0.0
        %789 = vmatprep.subr.mxu0 0.0
        %790 = vmatpush1.xpose.msra.mxu0 0.0
        %791 = vmatprep.subr.mxu0 0.0
        %792 = vmatpush1.xpose.msra.mxu0 0.0
        %793 = vmatprep.subr.mxu0 0.0
        %794 = vmatpush1.xpose.msra.mxu0 0.0
        %795 = vmatprep.subr.mxu0 0.0
        %796 = vmatpush1.xpose.msra.mxu0 0.0
        %797 = vmatprep.subr.mxu0 0.0
        %798 = vmatpush1.xpose.msra.mxu0 0.0
        %799 = vmatprep.subr.mxu0 0.0
        %800 = vmatpush1.xpose.msra.mxu0 0.0
        %801 = vmatprep.subr.mxu0 0.0
        %802 = vmatpush1.xpose.msra.mxu0 0.0
        %803 = vmatprep.subr.mxu0 0.0
        %804 = vmatpush1.xpose.msra.mxu0 0.0
        %805 = vmatprep.subr.mxu0 0.0
        %806 = vmatpush1.xpose.msra.mxu0 0.0
        %807 = vmatprep.subr.mxu0 0.0
        %808 = vmatpush1.xpose.msra.mxu0 0.0
        %809 = vmatprep.subr.mxu0 0.0
        %810 = vmatpush1.xpose.msra.mxu0 0.0
        %811 = vmatprep.subr.mxu0 0.0
        %812 = vmatpush1.xpose.msra.mxu0 0.0
        %813 = vmatprep.subr.mxu0 0.0
        %814 = vmatpush1.xpose.msra.mxu0 0.0
        %815 = vmatprep.subr.mxu0 0.0
        %816 = vmatpush1.xpose.msra.mxu0 0.0
        %817 = vmatprep.subr.mxu0 0.0
        %818 = vmatpush1.xpose.msra.mxu0 0.0
        %819 = vmatprep.subr.mxu0 0.0
        %820 = vmatpush1.xpose.msra.mxu0 0.0
        %821 = vmatprep.subr.mxu0 0.0
        %822 = vmatpush1.xpose.msra.mxu0 0.0
        %823 = vmatprep.subr.mxu0 0.0
        %824 = vmatpush1.xpose.msra.mxu0 0.0
        %825 = vmatprep.subr.mxu0 0.0
        %826 = vmatpush1.xpose.msra.mxu0 0.0
        %827 = vmatprep.mubr.f32.mxu0 0.0
        %828 = vmatmul.mubr.f32.gmra.mrb[0].mxu0 %v759
        %v829 = vpop.f32.mrb[0].mxu0
        %v830 = vadd.f32 0.0, %v829
        %v831 = vpop.f32.mrb[0].mxu0
        %832 = vdwg.mxu0
        %833 = vmatprep.subr.mxu0 0.0
        %834 = vmatpush1.xpose.msra.mxu0 %v695
        %835 = vmatprep.subr.mxu0 0.0
        %836 = vmatpush1.xpose.msra.mxu0 0.0
        %837 = vmatprep.subr.mxu0 0.0
        %838 = vmatpush1.xpose.msra.mxu0 0.0
        %839 = vmatprep.subr.mxu0 0.0
        %840 = vmatpush1.xpose.msra.mxu0 0.0
        %841 = vmatprep.subr.mxu0 0.0
        %842 = vmatpush1.xpose.msra.mxu0 0.0
        %843 = vmatprep.subr.mxu0 0.0
        %844 = vmatpush1.xpose.msra.mxu0 0.0
        %845 = vmatprep.subr.mxu0 0.0
        %846 = vmatpush1.xpose.msra.mxu0 0.0
        %847 = vmatprep.subr.mxu0 0.0
        %848 = vmatpush1.xpose.msra.mxu0 0.0
        %849 = vmatprep.subr.mxu0 0.0
        %850 = vmatpush1.xpose.msra.mxu0 0.0
        %851 = vmatprep.subr.mxu0 0.0
        %852 = vmatpush1.xpose.msra.mxu0 0.0
        %853 = vmatprep.subr.mxu0 0.0
        %854 = vmatpush1.xpose.msra.mxu0 0.0
        %855 = vmatprep.subr.mxu0 0.0
        %856 = vmatpush1.xpose.msra.mxu0 0.0
        %857 = vmatprep.subr.mxu0 0.0
        %858 = vmatpush1.xpose.msra.mxu0 0.0
        %859 = vmatprep.subr.mxu0 0.0
        %860 = vmatpush1.xpose.msra.mxu0 0.0
        %861 = vmatprep.subr.mxu0 0.0
        %862 = vmatpush1.xpose.msra.mxu0 0.0
        %863 = vmatprep.subr.mxu0 0.0
        %864 = vmatpush1.xpose.msra.mxu0 0.0
        %865 = vmatprep.subr.mxu0 0.0
        %866 = vmatpush1.xpose.msra.mxu0 0.0
        %867 = vmatprep.subr.mxu0 0.0
        %868 = vmatpush1.xpose.msra.mxu0 0.0
        %869 = vmatprep.subr.mxu0 0.0
        %870 = vmatpush1.xpose.msra.mxu0 0.0
        %871 = vmatprep.subr.mxu0 0.0
        %872 = vmatpush1.xpose.msra.mxu0 0.0
        %873 = vmatprep.subr.mxu0 0.0
        %874 = vmatpush1.xpose.msra.mxu0 0.0
        %875 = vmatprep.subr.mxu0 0.0
        %876 = vmatpush1.xpose.msra.mxu0 0.0
        %877 = vmatprep.subr.mxu0 0.0
        %878 = vmatpush1.xpose.msra.mxu0 0.0
        %879 = vmatprep.subr.mxu0 0.0
        %880 = vmatpush1.xpose.msra.mxu0 0.0
        %881 = vmatprep.subr.mxu0 0.0
        %882 = vmatpush1.xpose.msra.mxu0 0.0
        %883 = vmatprep.subr.mxu0 0.0
        %884 = vmatpush1.xpose.msra.mxu0 0.0
        %885 = vmatprep.subr.mxu0 0.0
        %886 = vmatpush1.xpose.msra.mxu0 0.0
        %887 = vmatprep.subr.mxu0 0.0
        %888 = vmatpush1.xpose.msra.mxu0 0.0
        %889 = vmatprep.subr.mxu0 0.0
        %890 = vmatpush1.xpose.msra.mxu0 0.0
        %891 = vmatprep.subr.mxu0 0.0
        %892 = vmatpush1.xpose.msra.mxu0 0.0
        %893 = vmatprep.subr.mxu0 0.0
        %894 = vmatpush1.xpose.msra.mxu0 0.0
        %895 = vmatprep.subr.mxu0 0.0
        %896 = vmatpush1.xpose.msra.mxu0 0.0
        %897 = vmatprep.mubr.f32.mxu0 0.0
        %898 = vmatmul.mubr.f32.gmra.mrb[0].mxu0 %v760
        %v899 = vpop.f32.mrb[0].mxu0
        %v900 = vadd.f32 0.0, %v899
        %v901 = vpop.f32.mrb[0].mxu0
        %902 = vdwg.mxu0
        %v903 = vadd.f32 %v761, %v830
        %v904 = vadd.f32 %v762, %v900
        %vm905 = vcmask 31744
        %906 = vst.msk [vmem:[#allocation2] sm:$0xff] %vm905, %v903
        %907 = vst.msk [vmem:[#allocation2 + $0x8] sm:$0xff] %vm905, %v904
        %v908 = vld [vmem:[#allocation3] sm:$0xff]
        %v909 = vld [vmem:[#allocation3 + $0x8] sm:$0xff]
        %v910 = vld [vmem:[%s574] sm:$0xff]
        %v911 = vld [vmem:[%s574 + $0x8] sm:$0xff]
        %912 = vmatprep.subr.mxu0 0.0
        %913 = vmatpush1.xpose.msra.mxu0 %v910
        %914 = vmatprep.subr.mxu0 0.0
        %915 = vmatpush1.xpose.msra.mxu0 0.0
        %916 = vmatprep.subr.mxu0 0.0
        %917 = vmatpush1.xpose.msra.mxu0 0.0
        %918 = vmatprep.subr.mxu0 0.0
        %919 = vmatpush1.xpose.msra.mxu0 0.0
        %920 = vmatprep.subr.mxu0 0.0
        %921 = vmatpush1.xpose.msra.mxu0 0.0
        %922 = vmatprep.subr.mxu0 0.0
        %923 = vmatpush1.xpose.msra.mxu0 0.0
        %924 = vmatprep.subr.mxu0 0.0
        %925 = vmatpush1.xpose.msra.mxu0 0.0
        %926 = vmatprep.subr.mxu0 0.0
        %927 = vmatpush1.xpose.msra.mxu0 0.0
        %928 = vmatprep.subr.mxu0 0.0
        %929 = vmatpush1.xpose.msra.mxu0 0.0
        %930 = vmatprep.subr.mxu0 0.0
        %931 = vmatpush1.xpose.msra.mxu0 0.0
        %932 = vmatprep.subr.mxu0 0.0
        %933 = vmatpush1.xpose.msra.mxu0 0.0
        %934 = vmatprep.subr.mxu0 0.0
        %935 = vmatpush1.xpose.msra.mxu0 0.0
        %936 = vmatprep.subr.mxu0 0.0
        %937 = vmatpush1.xpose.msra.mxu0 0.0
        %938 = vmatprep.subr.mxu0 0.0
        %939 = vmatpush1.xpose.msra.mxu0 0.0
        %940 = vmatprep.subr.mxu0 0.0
        %941 = vmatpush1.xpose.msra.mxu0 0.0
        %942 = vmatprep.subr.mxu0 0.0
        %943 = vmatpush1.xpose.msra.mxu0 0.0
        %944 = vmatprep.subr.mxu0 0.0
        %945 = vmatpush1.xpose.msra.mxu0 0.0
        %946 = vmatprep.subr.mxu0 0.0
        %947 = vmatpush1.xpose.msra.mxu0 0.0
        %948 = vmatprep.subr.mxu0 0.0
        %949 = vmatpush1.xpose.msra.mxu0 0.0
        %950 = vmatprep.subr.mxu0 0.0
        %951 = vmatpush1.xpose.msra.mxu0 0.0
        %952 = vmatprep.subr.mxu0 0.0
        %953 = vmatpush1.xpose.msra.mxu0 0.0
        %954 = vmatprep.subr.mxu0 0.0
        %955 = vmatpush1.xpose.msra.mxu0 0.0
        %956 = vmatprep.subr.mxu0 0.0
        %957 = vmatpush1.xpose.msra.mxu0 0.0
        %958 = vmatprep.subr.mxu0 0.0
        %959 = vmatpush1.xpose.msra.mxu0 0.0
        %960 = vmatprep.subr.mxu0 0.0
        %961 = vmatpush1.xpose.msra.mxu0 0.0
        %962 = vmatprep.subr.mxu0 0.0
        %963 = vmatpush1.xpose.msra.mxu0 0.0
        %964 = vmatprep.subr.mxu0 0.0
        %965 = vmatpush1.xpose.msra.mxu0 0.0
        %966 = vmatprep.subr.mxu0 0.0
        %967 = vmatpush1.xpose.msra.mxu0 0.0
        %968 = vmatprep.subr.mxu0 0.0
        %969 = vmatpush1.xpose.msra.mxu0 0.0
        %970 = vmatprep.subr.mxu0 0.0
        %971 = vmatpush1.xpose.msra.mxu0 0.0
        %972 = vmatprep.subr.mxu0 0.0
        %973 = vmatpush1.xpose.msra.mxu0 0.0
        %974 = vmatprep.subr.mxu0 0.0
        %975 = vmatpush1.xpose.msra.mxu0 0.0
        %976 = vmatprep.mubr.f32.mxu0 0.0
        %977 = vmatmul.mubr.f32.gmra.mrb[0].mxu0 %v759
        %v978 = vpop.f32.mrb[0].mxu0
        %v979 = vadd.f32 0.0, %v978
        %v980 = vpop.f32.mrb[0].mxu0
        %981 = vdwg.mxu0
        %982 = vmatprep.subr.mxu0 0.0
        %983 = vmatpush1.xpose.msra.mxu0 %v911
        %984 = vmatprep.subr.mxu0 0.0
        %985 = vmatpush1.xpose.msra.mxu0 0.0
        %986 = vmatprep.subr.mxu0 0.0
        %987 = vmatpush1.xpose.msra.mxu0 0.0
        %988 = vmatprep.subr.mxu0 0.0
        %989 = vmatpush1.xpose.msra.mxu0 0.0
        %990 = vmatprep.subr.mxu0 0.0
        %991 = vmatpush1.xpose.msra.mxu0 0.0
        %992 = vmatprep.subr.mxu0 0.0
        %993 = vmatpush1.xpose.msra.mxu0 0.0
        %994 = vmatprep.subr.mxu0 0.0
        %995 = vmatpush1.xpose.msra.mxu0 0.0
        %996 = vmatprep.subr.mxu0 0.0
        %997 = vmatpush1.xpose.msra.mxu0 0.0
        %998 = vmatprep.subr.mxu0 0.0
        %999 = vmatpush1.xpose.msra.mxu0 0.0
        %1000 = vmatprep.subr.mxu0 0.0
        %1001 = vmatpush1.xpose.msra.mxu0 0.0
        %1002 = vmatprep.subr.mxu0 0.0
        %1003 = vmatpush1.xpose.msra.mxu0 0.0
        %1004 = vmatprep.subr.mxu0 0.0
        %1005 = vmatpush1.xpose.msra.mxu0 0.0
        %1006 = vmatprep.subr.mxu0 0.0
        %1007 = vmatpush1.xpose.msra.mxu0 0.0
        %1008 = vmatprep.subr.mxu0 0.0
        %1009 = vmatpush1.xpose.msra.mxu0 0.0
        %1010 = vmatprep.subr.mxu0 0.0
        %1011 = vmatpush1.xpose.msra.mxu0 0.0
        %1012 = vmatprep.subr.mxu0 0.0
        %1013 = vmatpush1.xpose.msra.mxu0 0.0
        %1014 = vmatprep.subr.mxu0 0.0
        %1015 = vmatpush1.xpose.msra.mxu0 0.0
        %1016 = vmatprep.subr.mxu0 0.0
        %1017 = vmatpush1.xpose.msra.mxu0 0.0
        %1018 = vmatprep.subr.mxu0 0.0
        %1019 = vmatpush1.xpose.msra.mxu0 0.0
        %1020 = vmatprep.subr.mxu0 0.0
        %1021 = vmatpush1.xpose.msra.mxu0 0.0
        %1022 = vmatprep.subr.mxu0 0.0
        %1023 = vmatpush1.xpose.msra.mxu0 0.0
        %1024 = vmatprep.subr.mxu0 0.0
        %1025 = vmatpush1.xpose.msra.mxu0 0.0
        %1026 = vmatprep.subr.mxu0 0.0
        %1027 = vmatpush1.xpose.msra.mxu0 0.0
        %1028 = vmatprep.subr.mxu0 0.0
        %1029 = vmatpush1.xpose.msra.mxu0 0.0
        %1030 = vmatprep.subr.mxu0 0.0
        %1031 = vmatpush1.xpose.msra.mxu0 0.0
        %1032 = vmatprep.subr.mxu0 0.0
        %1033 = vmatpush1.xpose.msra.mxu0 0.0
        %1034 = vmatprep.subr.mxu0 0.0
        %1035 = vmatpush1.xpose.msra.mxu0 0.0
        %1036 = vmatprep.subr.mxu0 0.0
        %1037 = vmatpush1.xpose.msra.mxu0 0.0
        %1038 = vmatprep.subr.mxu0 0.0
        %1039 = vmatpush1.xpose.msra.mxu0 0.0
        %1040 = vmatprep.subr.mxu0 0.0
        %1041 = vmatpush1.xpose.msra.mxu0 0.0
        %1042 = vmatprep.subr.mxu0 0.0
        %1043 = vmatpush1.xpose.msra.mxu0 0.0
        %1044 = vmatprep.subr.mxu0 0.0
        %1045 = vmatpush1.xpose.msra.mxu0 0.0
        %1046 = vmatprep.mubr.f32.mxu0 0.0
        %1047 = vmatmul.mubr.f32.gmra.mrb[0].mxu0 %v760
        %v1048 = vpop.f32.mrb[0].mxu0
        %v1049 = vadd.f32 0.0, %v1048
        %v1050 = vpop.f32.mrb[0].mxu0
        %1051 = vdwg.mxu0
        %v1052 = vadd.f32 %v908, %v979
        %v1053 = vadd.f32 %v909, %v1049
        %vm1054 = vcmask 64512
        %1055 = vst.msk [vmem:[#allocation3] sm:$0xff] %vm1054, %v1052
        %1056 = vst.msk [vmem:[#allocation3 + $0x8] sm:$0xff] %vm1054, %v1053
        %p1057 = scmp.eq.s32.totalorder %s42, 1
        // Predicated region
        $region121: #{tpu_custom_call.1} parent=67 // pred_check
          %p1058 = pneg %p1057
        $region122: #{tpu_custom_call.1} parent=67 // pred_check_branch
          %1060 = sbr.rel (%p1058) target = $region124
        $region123: #{tpu_custom_call.1} parent=67 // pred_region
          %v1061 = vld [vmem:[#allocation13] sm:$0x3]
          %v1062 = vld [vmem:[#allocation14] sm:$0x3]
          %s1063 = smul.u32 %s41, 256
          %v1064 = vstv %s1063
          %vm1065 = vcmp.ge.s32.totalorder %v736, %v1064
          %s1066 = sadd.s32 %s1063, 256
          %v1067 = vstv %s1066
          %vm1068 = vcmp.lt.s32.totalorder %v736, %v1067
          %vm1069 = vmand %vm1065, %vm1068
          %v1070 = vsel %vm1069, 1, 0
          %v1071 = vcvt.s32.f32 %v1070
          %v1072 = vlaneseq
          %v1073 = vshrl.u32 %v1072, 7
          %v1074 = vsub.s32 0, %v1073
          %v1075 = vrot.slane %v1061, %v1074
          %1077 = vbcast.lane.b32.xlu0 %v1075, 256
          %v1078 = vpop.permute.xlu0 %1077
          %v1079 = vlaneseq
          %v1080 = vshrl.u32 %v1079, 7
          %v1081 = vsub.s32 1, %v1080
          %v1082 = vrot.slane %v1061, %v1081
          %1084 = vbcast.lane.b32.xlu0 %v1082, 256
          %v1085 = vpop.permute.xlu0 %1084
          %vm1086 = vcmp.eq.s32.totalorder %v1078, %v738
          %vm1087 = vcmp.eq.s32.totalorder %v1085, %v738
          %v1088 = vsel %vm1086, 1, 0
          %v1089 = vsel %vm1087, 1, 0
          %v1090 = vcvt.s32.f32 %v1088
          %v1091 = vcvt.s32.f32 %v1089
          %v1092 = vld [vmem:[#allocation2] sm:$0xff]
          %v1093 = vld [vmem:[#allocation2 + $0x8] sm:$0xff]
          %v1094 = vmul.f32 %v1092, %v1090
          %v1095 = vmul.f32 %v1093, %v1091
          %v1096 = vsel %vm905, %v1094, 0.0
          %1097 = vadd.xlane.f32.xlu0 %v1096
          %v1098 = vpop.xlane.xlu0 %1097
          %v1099 = vsel %vm905, %v1095, 0.0
          %1100 = vadd.xlane.f32.xlu0 %v1099
          %v1101 = vpop.xlane.xlu0 %1100
          %v1102 = vmul.f32 %v1062, %v1071
          %vm1103 = vcmp.gt.f32.partialorder %v1102, 0.0
          %v1106 = vlaneseq
          %v1107 = vshrl.u32 %v1106, 7
          %v1108 = vsub.s32 %v738, %v1107
          %v1109 = vrot.slane %v1098, %v1108
          %v1110 = vlaneseq
          %v1111 = vshrl.u32 %v1110, 7
          %v1112 = vsub.s32 %v738, %v1111
          %v1113 = vrot.slane %v1101, %v1112
          %vm1114 = vcmask 1041409
          %v1115 = vsel %vm1114, %v1113, %v1109
          %v1117 = vsel %vm1103, %v1115, 1.0
          %v1118 = vsub.f32 1.0, %v1117
          %v1119 = vlog2.pop %v1117
          %v1120 = vmul.f32 %v1119, 0.6931472
          %v1121 = vmul.f32 %v1120, %v1118
          %v1122 = vmul.f32 %v1121, %v1118
          %v1123 = vmul.f32 %v1122, %v1102
          %vm1124 = vcmask 58368
          %v1125 = vsel %vm1124, %v1123, 0.0
          %1126 = vadd.xlane.f32.xlu0 %v1125
          %v1127 = vpop.xlane.xlu0 %1126
          %v1128 = vrot.slane %v1127, 4
          %v1129 = vadd.f32 %v1127, %v1128
          %v1130 = vrot.slane %v1129, 2
          %v1131 = vadd.f32 %v1129, %v1130
          %v1132 = vrot.slane %v1131, 1
          %v1133 = vadd.f32 %v1131, %v1132
          %s1134 = vtos %v1133
          %v1135 = vsel %vm1124, %v1062, 0.0
          %1136 = vadd.xlane.f32.xlu0 %v1135
          %v1137 = vpop.xlane.xlu0 %1136
          %v1138 = vrot.slane %v1137, 4
          %v1139 = vadd.f32 %v1137, %v1138
          %v1140 = vrot.slane %v1139, 2
          %v1141 = vadd.f32 %v1139, %v1140
          %v1142 = vrot.slane %v1141, 1
          %v1143 = vadd.f32 %v1141, %v1142
          %s1144 = vtos %v1143
          %v1145 = vld [vmem:[#allocation4] sm:$0x1]
          %vm1146 = vcmask 1040384
          %v1147 = vsel %vm1146, %v1145, 0.0
          %1148 = vadd.xlane.f32.xlu0 %v1147
          %v1149 = vpop.xlane.xlu0 %1148
          %v1150 = vrot.slane %v1149, 4
          %v1151 = vadd.f32 %v1149, %v1150
          %v1152 = vrot.slane %v1151, 2
          %v1153 = vadd.f32 %v1151, %v1152
          %v1154 = vrot.slane %v1153, 1
          %v1155 = vadd.f32 %v1153, %v1154
          %s1156 = vtos %v1155
          %s1157 = smul.f32 %s1156, 0.0078125
          %p1158 = scmp.gt.f32.partialorder %s1144, 0.0
          %s1159 = sadd.f32 %s1134, %s1157
          %s1160 = ssub.f32 0.0, %s1159
          %s1161 = smax.f32 %s1144, 1.0
          %v1162 = vstv %s1161
          %v1163 = vrcp.pop %v1162
          %s1164 = vtos %v1163
          %s1165 = smul.f32 %s1160, %s1164
          %s1166 = ssub.f32 0.0, %s1157
          %s1167 = scalar_select %p1158, %s1165, %s1166
          %v1168 = vld [vmem:[#allocation3] sm:$0xff]
          %v1169 = vld [vmem:[#allocation3 + $0x8] sm:$0xff]
          %v1170 = vld [vmem:[#allocation17] sm:$0xff]
          %v1171 = vld [vmem:[#allocation17 + $0x8] sm:$0xff]
          %v1172 = vld [vmem:[#allocation16] sm:$0xff]
          %v1173 = vld [vmem:[#allocation16 + $0x8] sm:$0xff]
          %v1174 = vmul.f32 %v1168, %v1170
          %v1175 = vmul.f32 %v1169, %v1171
          %v1176 = vmul.f32 %v1172, %v1170
          %v1177 = vmul.f32 %v1173, %v1171
          %v1178 = vsub.f32 %v1174, %v1176
          %v1179 = vsub.f32 %v1175, %v1177
          %v1180 = vand.u32 2147483647, %v1178
          %v1181 = vand.u32 2147483647, %v1179
          %v1182 = vlaneseq
          %v1183 = vshrl.u32 %v1182, 7
          %v1184 = vsub.s32 0, %v1183
          %v1185 = vrot.slane %v1071, %v1184
          %1187 = vbcast.lane.b32.xlu0 %v1185, 256
          %v1188 = vpop.permute.xlu0 %1187
          %v1189 = vlaneseq
          %v1190 = vshrl.u32 %v1189, 7
          %v1191 = vsub.s32 1, %v1190
          %v1192 = vrot.slane %v1071, %v1191
          %1194 = vbcast.lane.b32.xlu0 %v1192, 256
          %v1195 = vpop.permute.xlu0 %1194
          %v1196 = vmul.f32 %v1180, %v1188
          %v1197 = vmul.f32 %v1181, %v1195
          %vm1198 = vcmask 15360
          %v1199 = vsel %vm1198, %v1196, 0.0
          %v1200 = vsel %vm1198, %v1197, 0.0
          %v1201 = vadd.f32 %v1199, %v1200
          %1202 = vadd.xlane.f32.xlu0 %v1201
          %v1203 = vpop.xlane.xlu0 %1202
          %v1204 = vrot.slane %v1203, 4
          %v1205 = vadd.f32 %v1203, %v1204
          %v1206 = vrot.slane %v1205, 2
          %v1207 = vadd.f32 %v1205, %v1206
          %v1208 = vrot.slane %v1207, 1
          %v1209 = vadd.f32 %v1207, %v1208
          %s1210 = vtos %v1209
          %v1211 = vsel %vm1198, %v1170, 0.0
          %v1212 = vsel %vm1198, %v1171, 0.0
          %v1213 = vadd.f32 %v1211, %v1212
          %1214 = vadd.xlane.f32.xlu0 %v1213
          %v1215 = vpop.xlane.xlu0 %1214
          %v1216 = vrot.slane %v1215, 4
          %v1217 = vadd.f32 %v1215, %v1216
          %v1218 = vrot.slane %v1217, 2
          %v1219 = vadd.f32 %v1217, %v1218
          %v1220 = vrot.slane %v1219, 1
          %v1221 = vadd.f32 %v1219, %v1220
          %s1222 = vtos %v1221
          %s1223 = sadd.f32 %s1222, 0.0001
          %v1224 = vstv %s1223
          %v1225 = vrcp.pop %v1224
          %s1226 = vtos %v1225
          %s1227 = smul.f32 %s1210, %s1226
          %v1228 = vld [vmem:[#allocation20] sm:$0xff]
          %v1229 = vld [vmem:[#allocation20 + $0x8] sm:$0xff]
          %v1230 = vld [vmem:[#allocation19] sm:$0xff]
          %v1231 = vld [vmem:[#allocation19 + $0x8] sm:$0xff]
          %1234 = vrot.lane.b32.xlu0 %v1228, 2
          %v1235 = vpop.permute.xlu0 %1234
          %1236 = vrot.lane.b32.xlu0 %v1229, 2
          %v1237 = vpop.permute.xlu0 %1236
          %v1240 = vmul.f32 %v1168, %v1235
          %v1241 = vmul.f32 %v1169, %v1237
          %v1242 = vmul.f32 %v1230, %v1228
          %v1243 = vmul.f32 %v1231, %v1229
          %1246 = vrot.lane.b32.xlu0 %v1242, 2
          %v1247 = vpop.permute.xlu0 %1246
          %1248 = vrot.lane.b32.xlu0 %v1243, 2
          %v1249 = vpop.permute.xlu0 %1248
          %v1252 = vsub.f32 %v1240, %v1247
          %v1253 = vsub.f32 %v1241, %v1249
          %v1254 = vand.u32 2147483647, %v1252
          %v1255 = vand.u32 2147483647, %v1253
          %v1256 = vmul.f32 %v1254, %v1188
          %v1257 = vmul.f32 %v1255, %v1195
          %1260 = vrot.lane.b32.xlu0 %v1256, 126
          %v1261 = vpop.permute.xlu0 %1260
          %1262 = vrot.lane.b32.xlu0 %v1257, 126
          %v1263 = vpop.permute.xlu0 %1262
          %v1266 = vsel %vm1198, %v1261, 0.0
          %v1267 = vsel %vm1198, %v1263, 0.0
          %v1268 = vadd.f32 %v1266, %v1267
          %1269 = vadd.xlane.f32.xlu0 %v1268
          %v1270 = vpop.xlane.xlu0 %1269
          %v1271 = vrot.slane %v1270, 4
          %v1272 = vadd.f32 %v1270, %v1271
          %v1273 = vrot.slane %v1272, 2
          %v1274 = vadd.f32 %v1272, %v1273
          %v1275 = vrot.slane %v1274, 1
          %v1276 = vadd.f32 %v1274, %v1275
          %s1277 = vtos %v1276
          %v1278 = vsel %vm1198, %v1228, 0.0
          %v1279 = vsel %vm1198, %v1229, 0.0
          %v1280 = vadd.f32 %v1278, %v1279
          %1281 = vadd.xlane.f32.xlu0 %v1280
          %v1282 = vpop.xlane.xlu0 %1281
          %v1283 = vrot.slane %v1282, 4
          %v1284 = vadd.f32 %v1282, %v1283
          %v1285 = vrot.slane %v1284, 2
          %v1286 = vadd.f32 %v1284, %v1285
          %v1287 = vrot.slane %v1286, 1
          %v1288 = vadd.f32 %v1286, %v1287
          %s1289 = vtos %v1288
          %s1290 = sadd.f32 %s1289, 0.0001
          %v1291 = vstv %s1290
          %v1292 = vrcp.pop %v1291
          %s1293 = vtos %v1292
          %s1294 = smul.f32 %s1277, %s1293
          %v1295 = vld [vmem:[#allocation23] sm:$0xff]
          %v1296 = vld [vmem:[#allocation23 + $0x8] sm:$0xff]
          %v1297 = vld [vmem:[#allocation22] sm:$0xff]
          %v1298 = vld [vmem:[#allocation22 + $0x8] sm:$0xff]
          %1301 = vrot.lane.b32.xlu0 %v1295, 4
          %v1302 = vpop.permute.xlu0 %1301
          %1303 = vrot.lane.b32.xlu0 %v1296, 4
          %v1304 = vpop.permute.xlu0 %1303
          %v1307 = vmul.f32 %v1168, %v1302
          %v1308 = vmul.f32 %v1169, %v1304
          %v1309 = vmul.f32 %v1297, %v1295
          %v1310 = vmul.f32 %v1298, %v1296
          %1313 = vrot.lane.b32.xlu0 %v1309, 4
          %v1314 = vpop.permute.xlu0 %1313
          %1315 = vrot.lane.b32.xlu0 %v1310, 4
          %v1316 = vpop.permute.xlu0 %1315
          %v1319 = vsub.f32 %v1307, %v1314
          %v1320 = vsub.f32 %v1308, %v1316
          %v1321 = vand.u32 2147483647, %v1319
          %v1322 = vand.u32 2147483647, %v1320
          %v1323 = vmul.f32 %v1321, %v1188
          %v1324 = vmul.f32 %v1322, %v1195
          %1327 = vrot.lane.b32.xlu0 %v1323, 124
          %v1328 = vpop.permute.xlu0 %1327
          %1329 = vrot.lane.b32.xlu0 %v1324, 124
          %v1330 = vpop.permute.xlu0 %1329
          %v1333 = vsel %vm905, %v1328, 0.0
          %v1334 = vsel %vm905, %v1330, 0.0
          %v1335 = vadd.f32 %v1333, %v1334
          %1336 = vadd.xlane.f32.xlu0 %v1335
          %v1337 = vpop.xlane.xlu0 %1336
          %v1338 = vrot.slane %v1337, 4
          %v1339 = vadd.f32 %v1337, %v1338
          %v1340 = vrot.slane %v1339, 2
          %v1341 = vadd.f32 %v1339, %v1340
          %v1342 = vrot.slane %v1341, 1
          %v1343 = vadd.f32 %v1341, %v1342
          %s1344 = vtos %v1343
          %v1345 = vsel %vm905, %v1295, 0.0
          %v1346 = vsel %vm905, %v1296, 0.0
          %v1347 = vadd.f32 %v1345, %v1346
          %1348 = vadd.xlane.f32.xlu0 %v1347
          %v1349 = vpop.xlane.xlu0 %1348
          %v1350 = vrot.slane %v1349, 4
          %v1351 = vadd.f32 %v1349, %v1350
          %v1352 = vrot.slane %v1351, 2
          %v1353 = vadd.f32 %v1351, %v1352
          %v1354 = vrot.slane %v1353, 1
          %v1355 = vadd.f32 %v1353, %v1354
          %s1356 = vtos %v1355
          %s1357 = sadd.f32 %s1356, 0.0001
          %v1358 = vstv %s1357
          %v1359 = vrcp.pop %v1358
          %s1360 = vtos %v1359
          %s1361 = smul.f32 %s1344, %s1360
          %s1362 = sadd.f32 %s1167, %s1227
          %s1363 = sadd.f32 %s1362, %s1294
          %s1364 = smul.f32 %s1361, 0.1
          %s1365 = sadd.f32 %s1363, %s1364
          %v1366 = vstv %s1167
          %v1367 = vstv %s1227
          %v1368 = vstv %s1294
          %v1369 = vstv %s1361
          %v1370 = vstv %s1365
          %v1371 = vsel %vm1146, %v1366, %v1367
          %vm1372 = vcmask 1041408
          %v1373 = vsel %vm1372, %v1371, %v1368
          %vm1374 = vcmask 1042432
          %v1375 = vsel %vm1374, %v1373, %v1369
          %v1376 = vsel %vm716, %v1375, %v1370
          %vm1377 = vcmask 1044480
          %v1378 = vsel %vm1377, %v1376, 0.0
          %vm1379 = vcmask 1045504
          %v1380 = vsel %vm1379, %v1378, 0.0
          %vm1381 = vcmask 1046528
          %v1382 = vsel %vm1381, %v1380, 0.0
          %1383 = vst [vmem:[%s660] sm:$0xff] %v1382
        $region124: #{tpu_custom_call.1} parent=67 // pred_fallthru
          _
        %s1384 = sand.u32 %s336, 1
        %s1385 = scalar_lea.sflag [#allocation7], %s1384
        %s1386 = sand.u32 %s336, 1
        %s1387 = smul.addr %s1386, 8
        %s1388 = scalar_lea.vmem [#allocation25], %s1387
        // Predicated region
        $region125: #{tpu_custom_call.1} parent=67 // pred_check
          %p1389 = pneg %p346
        $region126: #{tpu_custom_call.1} parent=67 // pred_check_branch
          %1391 = sbr.rel (%p1389) target = $region128
        $region127: #{tpu_custom_call.1} parent=67 // pred_region
          %s1393 = ssub.s32 128, 128
          %1394 = vsyncadd %s1385, %s1393
          %s1395 = smul.addr %s41, 128
          %s1396 = scalar_lea.hbm %s12, %s1395
          %s1398 = sshll.u32 %s1388, 4
          %s1399 = int_to_ptr.vmem [resolvable:$true] %s1398
          %1401 = dma.vmem_to_hbm [thread:$0]  %s1399, 128, %s1396, %s1385
        $region128: #{tpu_custom_call.1} parent=67 // pred_fallthru
          _
      $region68: #{tpu_custom_call.1} parent=5 // pred_fallthru
        _
      %p1402 = scmp.le.s32.totalorder 2, %s32
      // Predicated region
      $region129: #{tpu_custom_call.1} parent=5 // pred_check
        %p1403 = pneg %p1402
      $region130: #{tpu_custom_call.1} parent=5 // pred_check_branch
        %1405 = sbr.rel (%p1403) target = $region132
      $region131: #{tpu_custom_call.1} parent=5 // pred_region
        %s1406 = ssub.s32 %s32, 2
        // Predicated region
        $region133: #{tpu_custom_call.1} parent=131 // pred_check
          %p1407 = pneg %p352
        $region134: #{tpu_custom_call.1} parent=131 // pred_check_branch
          %1409 = sbr.rel (%p1407) target = $region136
        $region135: #{tpu_custom_call.1} parent=131 // pred_region
          %s1410 = sand.u32 %s337, 1
          %s1411 = scalar_lea.sflag [#allocation7], %s1410
          %s1412 = sand.u32 %s337, 1
          %s1413 = smul.addr %s1412, 8
          %s1414 = scalar_lea.vmem [#allocation25], %s1413
          %1415 = dma.done %s1411, 128
        $region136: #{tpu_custom_call.1} parent=131 // pred_fallthru
          _
      $region132: #{tpu_custom_call.1} parent=5 // pred_fallthru
        _
    $region6: #{tpu_custom_call.1} parent=1 // loop_footer
      %s36 = sadd.s32 1, %s32
    $region7: #{tpu_custom_call.1} parent=1 // loop_footer_branch
      %31 = sbr.rel target = $region3
    $region8: #{tpu_custom_call.1} parent=1 // loop_exit
      _
    %1416 = vsyncpa [#allocation6], 1
    %s1417 = scalar_lea.sflag [#allocation6], 1
    %1418 = vsyncpa %s1417, 1
    %1419 = vsyncpa [#allocation9], 1
    %s1420 = scalar_lea.sflag [#allocation9], 1
    %1421 = vsyncpa %s1420, 1
    %1422 = vsyncpa [#allocation12], 1
    %1423 = vsyncpa [#allocation15], 1
    %1424 = vsyncpa [#allocation18], 1
    %1425 = vsyncpa [#allocation21], 1
    %1426 = vsyncpa [#allocation24], 1
    %1427 = vsyncpa [#allocation7], 1
    %s1428 = scalar_lea.sflag [#allocation7], 1
    %1429 = vsyncpa %s1428, 1

</llo_original>
